<compile_context>
chip_gen: v7x
topology: tpu7x:2x2x1
jax: 0.10.0
libtpu: 0.0.40
codegen_flags: <defaults>
</compile_context>

<pallas_src>
import jax
import jax.numpy as jnp
from jax.experimental import pallas as pl
from jax.experimental.pallas import tpu as pltpu


_SQRT_2_OVER_PI = 0.7978845608028654


def _gelu_tanh(x):
    # Megatron's fused bias-gelu uses the tanh approximation of GELU.
    return 0.5 * x * (1.0 + jnp.tanh(_SQRT_2_OVER_PI * (x + 0.044715 * x * x * x)))


# Probe once whether this jax exposes single-buffered BlockSpecs (pl.Buffered / pipeline_mode).
try:
    pl.BlockSpec((8, 128), lambda i: (0, 0), pipeline_mode=pl.Buffered(1))
    _SINGLE_BUFFER_OK = True
except Exception:  # older jax without pipeline_mode / Buffered
    _SINGLE_BUFFER_OK = False


def _vmem_capacity_bytes():
    try:
        return int(pltpu.get_tpu_info().vmem_capacity_bytes)
    except Exception:
        return 64 << 20  # conservative: v7x has 64 MiB per TensorCore


# ---------------------------------------------------------------------------
# Kernels
# ---------------------------------------------------------------------------

def _mlp_resident_kernel(x_ref, res_ref, w1_ref, b1_ref, w2_ref, b2_ref, o_ref):
    # dense H -> FF: native-dtype operands into the MXU, f32 accumulation.
    h = jnp.dot(x_ref[...], w1_ref[...], preferred_element_type=jnp.float32)
    h = _gelu_tanh(h + b1_ref[...].astype(jnp.float32))                     # [tm, FF] f32
    # dense FF -> H: cast activations back to the weight dtype for the bf16 MXU path
    # (no-op when everything is f32), accumulate in f32.
    y = jnp.dot(h.astype(w2_ref.dtype), w2_ref[...],
                preferred_element_type=jnp.float32)                         # [tm, H] f32
    # skip-bias-add bias (b2) + eval-mode dropout (identity) + residual.
    y = y + b2_ref[...].astype(jnp.float32) + res_ref[...].astype(jnp.float32)
    o_ref[...] = y.astype(o_ref.dtype)


def _mlp_stream_kernel(x_ref, res_ref, w1_ref, b1_ref, w2_ref, b2_ref, o_ref, acc_ref):
    ff = pl.program_id(1)

    @pl.when(ff == 0)
    def _():
        acc_ref[...] = jnp.zeros_like(acc_ref)

    h = jnp.dot(x_ref[...], w1_ref[...], preferred_element_type=jnp.float32)   # [tm, tf]
    h = _gelu_tanh(h + b1_ref[...].astype(jnp.float32))
    acc_ref[...] += jnp.dot(h.astype(w2_ref.dtype), w2_ref[...],
                            preferred_element_type=jnp.float32)                # [tm, H]

    @pl.when(ff == pl.num_programs(1) - 1)
    def _():
        y = acc_ref[...] + b2_ref[...].astype(jnp.float32) + res_ref[...].astype(jnp.float32)
        o_ref[...] = y.astype(o_ref.dtype)


# ---------------------------------------------------------------------------
# Wrapper
# ---------------------------------------------------------------------------

def vit_mlp_tp(hidden_states, input_tensor, w1, b1, w2, b2, *, tm=None, ff_block=None):
    B, S, H = hidden_states.shape
    FF = w1.shape[1]
    M = B * S

    x_flat = hidden_states.reshape(M, H)
    r_flat = input_tensor.reshape(M, H)
    b1_2d = b1.reshape(1, FF)
    b2_2d = b2.reshape(1, H)

    in_dtype = hidden_states.dtype
    in_isize = jnp.dtype(in_dtype).itemsize
    w_isize = jnp.dtype(w1.dtype).itemsize
    b_isize = jnp.dtype(b1.dtype).itemsize

    vmem_cap = _vmem_capacity_bytes()
    vmem_budget = int(vmem_cap * 0.9)

    # Token tile: MXU-shaped (multiple of 256 to match the v6e/v7x 256x256 MXU), larger when
    # VMEM allows; never larger than M; rounded to the packed sublane-row multiple for the
    # input dtype (8 f32 / 16 bf16 / 32 int8-fp8) unless it spans the whole token axis.
    if tm is None:
        tm = 512 if vmem_cap >= (96 << 20) else 256
    row_mult = {4: 8, 2: 16, 1: 32}.get(in_isize, 8)
    tm = min(int(tm), M)
    if tm < M:
        tm = max(row_mult, (tm // row_mult) * row_mult)
    grid_m = pl.cdiv(M, tm)   # partial last block handled by Pallas OOB masking (no jnp.pad)

    # --- VMEM budgeting / path selection -------------------------------------------------
    w_bytes = (w1.size + w2.size) * w_isize + (b1.size + b2.size) * b_isize
    act_bytes = 2 * 3 * tm * H * in_isize              # double-buffered x, residual, out tiles
    weight_bufs = 1 if _SINGLE_BUFFER_OK else 2

    def _resident_est():
        interm = tm * FF * (4 + w_isize) + tm * H * 4   # f32 h, cast-back h, f32 y
        return weight_bufs * w_bytes + act_bytes + interm

    def _stream_est(tf):
        wblk = 2 * ((H * tf + tf * H) * w_isize + tf * b_isize)   # double-buffered weight slabs
        interm = tm * tf * (4 + w_isize) + tm * H * 4
        return wblk + act_bytes + interm + tm * H * 4 + H * b_isize

    use_stream = ff_block is not None
    tf = ff_block
    if use_stream:
        assert FF % tf == 0 and (tf % 128 == 0 or tf == FF), \
            "ff_block must divide FF and be lane-aligned (multiple of 128)"
    elif _resident_est() > vmem_budget:
        candidates = [c for c in (4096, 2048, 1024, 512, 256, 128) if FF % c == 0]
        if candidates:
            tf = next((c for c in candidates if _stream_est(c) <= vmem_budget), candidates[-1])
            use_stream = True

    est = _stream_est(tf) if use_stream else _resident_est()
    # Always raise the scoped VMEM limit (v5e default is only 16 MiB), clamped to capacity.
    vmem_limit = max(32 << 20, min(int(est * 1.25), vmem_cap))

    cost = pl.CostEstimate(
        flops=4 * M * H * FF,            # two GEMMs
        transcendentals=M * FF,          # tanh in GELU
        bytes_accessed=w_bytes + 3 * M * H * in_isize,
    )
    out_shape = jax.ShapeDtypeStruct((M, H), in_dtype)

    if not use_stream:
        def _resident_call(single_buffer_weights):
            if single_buffer_weights:
                def wspec(shape, imap):
                    return pl.BlockSpec(shape, imap, pipeline_mode=pl.Buffered(1))
            else:
                wspec = pl.BlockSpec
            return pl.pallas_call(
                _mlp_resident_kernel,
                out_shape=out_shape,
                grid_spec=pltpu.PrefetchScalarGridSpec(
                    num_scalar_prefetch=0,
                    grid=(grid_m,),
                    in_specs=[
                        pl.BlockSpec((tm, H), lambda i: (i, 0)),   # x tile
                        pl.BlockSpec((tm, H), lambda i: (i, 0)),   # residual tile
                        wspec((H, FF), lambda i: (0, 0)),          # W1 (resident)
                        wspec((1, FF), lambda i: (0, 0)),          # b1
                        wspec((FF, H), lambda i: (0, 0)),          # W2 (resident)
                        wspec((1, H), lambda i: (0, 0)),           # b2
                    ],
                    out_specs=pl.BlockSpec((tm, H), lambda i: (i, 0)),
                ),
                compiler_params=pltpu.CompilerParams(
                    dimension_semantics=("parallel",),
                    vmem_limit_bytes=vmem_limit,
                ),
                cost_estimate=cost,
            )(x_flat, r_flat, w1, b1_2d, w2, b2_2d)

        if _SINGLE_BUFFER_OK:
            try:
                out_flat = _resident_call(True)
            except Exception:
                out_flat = _resident_call(False)   # lowering rejected Buffered(1): fall back
        else:
            out_flat = _resident_call(False)
        return out_flat.reshape(B, S, H)

    # FF-streaming path: weights sliced along FF, f32 accumulator resident in scratch.
    grid_ff = FF // tf
    out_flat = pl.pallas_call(
        _mlp_stream_kernel,
        out_shape=out_shape,
        grid_spec=pltpu.PrefetchScalarGridSpec(
            num_scalar_prefetch=0,
            grid=(grid_m, grid_ff),                       # reduction (FF) axis last
            in_specs=[
                pl.BlockSpec((tm, H), lambda i, f: (i, 0)),   # x tile
                pl.BlockSpec((tm, H), lambda i, f: (i, 0)),   # residual tile
                pl.BlockSpec((H, tf), lambda i, f: (0, f)),   # W1[:, ff]
                pl.BlockSpec((1, tf), lambda i, f: (0, f)),   # b1[ff]
                pl.BlockSpec((tf, H), lambda i, f: (f, 0)),   # W2[ff, :]
                pl.BlockSpec((1, H), lambda i, f: (0, 0)),    # b2
            ],
            out_specs=pl.BlockSpec((tm, H), lambda i, f: (i, 0)),
            scratch_shapes=[pltpu.VMEM((tm, H), jnp.float32)],
        ),
        compiler_params=pltpu.CompilerParams(
            dimension_semantics=("parallel", "arbitrary"),
            vmem_limit_bytes=vmem_limit,
        ),
        cost_estimate=cost,
    )(x_flat, r_flat, w1, b1_2d, w2, b2_2d)
    return out_flat.reshape(B, S, H)


# ---------------------------------------------------------------------------
# Reference + self-test
# ---------------------------------------------------------------------------

def _reference(hidden_states, input_tensor, w1, b1, w2, b2):
    x = hidden_states.astype(jnp.float32)
    h = _gelu_tanh(x @ w1.astype(jnp.float32) + b1.astype(jnp.float32))
    y = h @ w2.astype(jnp.float32) + b2.astype(jnp.float32)
    return y + input_tensor.astype(jnp.float32)


if __name__ == "__main__":
    # Small shapes consistent with the module: batch=2, seq=9 (odd on purpose so a forced
    # small token tile produces a partial last block), hidden=128, ffn=4*hidden.
    B, S, H = 2, 9, 128
    FF = 4 * H
    init_std = 0.02

    key = jax.random.PRNGKey(0)
    k_x, k_r, k_w1, k_w2, k_b1, k_b2 = jax.random.split(key, 6)

    hidden_states = jax.random.normal(k_x, (B, S, H), dtype=jnp.float32)
    input_tensor = jax.random.normal(k_r, (B, S, H), dtype=jnp.float32)
    # Megatron init_method_normal / scaled init; non-zero biases so bias handling is tested.
    w1 = init_std * jax.random.normal(k_w1, (H, FF), dtype=jnp.float32)
    b1 = 0.1 * jax.random.normal(k_b1, (FF,), dtype=jnp.float32)
    w2 = init_std * jax.random.normal(k_w2, (FF, H), dtype=jnp.float32)
    b2 = 0.1 * jax.random.normal(k_b2, (H,), dtype=jnp.float32)

    ref = _reference(hidden_states, input_tensor, w1, b1, w2, b2)

    # 1) f32, resident-weight path (single tile over the whole token axis).
    out = jax.block_until_ready(vit_mlp_tp(hidden_states, input_tensor, w1, b1, w2, b2))
    assert out.shape == (B, S, H)
    assert jnp.allclose(out, ref, atol=1e-3, rtol=1e-3), "f32 resident path mismatch"

    # 2) f32, forced small tm so the last token block is partial (exercises OOB masking
    #    without any wrapper-side padding).
    out_part = jax.block_until_ready(
        vit_mlp_tp(hidden_states, input_tensor, w1, b1, w2, b2, tm=8))
    assert jnp.allclose(out_part, ref, atol=1e-3, rtol=1e-3), "partial-block masking mismatch"

    # 3) f32, forced FF-streaming path (accumulator over the FF grid axis).
    out_stream = jax.block_until_ready(
        vit_mlp_tp(hidden_states, input_tensor, w1, b1, w2, b2, tm=8, ff_block=128))
    assert jnp.allclose(out_stream, ref, atol=1e-3, rtol=1e-3), "FF-streaming path mismatch"

    # 4) bf16 fast path: bf16 activations/weights into the MXU with f32 accumulation;
    #    biases kept in f32 (Megatron convention).
    cast = lambda a: a.astype(jnp.bfloat16)
    out_bf = jax.block_until_ready(
        vit_mlp_tp(cast(hidden_states), cast(input_tensor), cast(w1), b1, cast(w2), b2))
    assert out_bf.shape == (B, S, H) and out_bf.dtype == jnp.bfloat16
    assert jnp.allclose(out_bf.astype(jnp.float32), ref, atol=5e-2, rtol=5e-2), \
        "bf16 path mismatch"

    print("KERNEL_OK")
</pallas_src>

<mosaic_0001>
module attributes {stable_mosaic.version = 11 : i64} {
  func.func @_mlp_resident_kernel(%arg0: i32, %arg1: memref<18x128xf32, #tpu.memory_space<vmem>>, %arg2: memref<18x128xf32, #tpu.memory_space<vmem>>, %arg3: memref<128x512xf32, #tpu.memory_space<vmem>>, %arg4: memref<1x512xf32, #tpu.memory_space<vmem>>, %arg5: memref<512x128xf32, #tpu.memory_space<vmem>>, %arg6: memref<1x128xf32, #tpu.memory_space<vmem>>, %arg7: memref<18x128xf32, #tpu.memory_space<vmem>>) attributes {dimension_semantics = [#tpu.dimension_semantics<parallel>], iteration_bounds = array<i64: 1>, scalar_prefetch = 0 : i64, scratch_operands = 0 : i64, tpu.core_type = #tpu.core_type<tc>, window_params = [{transform_indices = @transform_0, window_bounds = array<i64: 18, 128>}, {transform_indices = @transform_1, window_bounds = array<i64: 18, 128>}, {pipeline_mode = #tpu.pipeline_mode<synchronous>, transform_indices = @transform_2, window_bounds = array<i64: 128, 512>}, {pipeline_mode = #tpu.pipeline_mode<synchronous>, transform_indices = @transform_3, window_bounds = array<i64: 1, 512>}, {pipeline_mode = #tpu.pipeline_mode<synchronous>, transform_indices = @transform_4, window_bounds = array<i64: 512, 128>}, {pipeline_mode = #tpu.pipeline_mode<synchronous>, transform_indices = @transform_5, window_bounds = array<i64: 1, 128>}, {transform_indices = @transform_6, window_bounds = array<i64: 18, 128>}]} {
    %c0 = arith.constant 0 : index
    %c0_0 = arith.constant 0 : index
    %0 = vector.load %arg1[%c0, %c0_0] : memref<18x128xf32, #tpu.memory_space<vmem>>, vector<18x128xf32>
    %c0_1 = arith.constant 0 : index
    %c0_2 = arith.constant 0 : index
    %1 = vector.load %arg3[%c0_1, %c0_2] : memref<128x512xf32, #tpu.memory_space<vmem>>, vector<128x512xf32>
    %cst = arith.constant dense<0.000000e+00> : vector<18x512xf32>
    %2 = tpu.matmul %0, %1, %cst {dimension_numbers = #tpu.dot_dimension_numbers<[1], [0], [0], [1], [0, 0, 1, 1], [], []>} : vector<18x128xf32>, vector<128x512xf32>, vector<18x512xf32> -> vector<18x512xf32>
    %c0_3 = arith.constant 0 : index
    %c0_4 = arith.constant 0 : index
    %3 = vector.load %arg4[%c0_3, %c0_4] : memref<1x512xf32, #tpu.memory_space<vmem>>, vector<1x512xf32>
    %4 = vector.broadcast %3 : vector<1x512xf32> to vector<18x512xf32>
    %5 = arith.addf %2, %4 : vector<18x512xf32>
    %cst_5 = arith.constant 5.000000e-01 : f32
    %6 = vector.broadcast %cst_5 : f32 to vector<18x512xf32>
    %7 = arith.mulf %6, %5 : vector<18x512xf32>
    %cst_6 = arith.constant 4.471500e-02 : f32
    %8 = vector.broadcast %cst_6 : f32 to vector<18x512xf32>
    %9 = arith.mulf %8, %5 : vector<18x512xf32>
    %10 = arith.mulf %9, %5 : vector<18x512xf32>
    %11 = arith.mulf %10, %5 : vector<18x512xf32>
    %12 = arith.addf %5, %11 : vector<18x512xf32>
    %cst_7 = arith.constant 0.797884583 : f32
    %13 = vector.broadcast %cst_7 : f32 to vector<18x512xf32>
    %14 = arith.mulf %13, %12 : vector<18x512xf32>
    %15 = math.tanh %14 : vector<18x512xf32>
    %cst_8 = arith.constant 1.000000e+00 : f32
    %16 = vector.broadcast %cst_8 : f32 to vector<18x512xf32>
    %17 = arith.addf %16, %15 : vector<18x512xf32>
    %18 = arith.mulf %7, %17 : vector<18x512xf32>
    %c0_9 = arith.constant 0 : index
    %c0_10 = arith.constant 0 : index
    %19 = vector.load %arg5[%c0_9, %c0_10] : memref<512x128xf32, #tpu.memory_space<vmem>>, vector<512x128xf32>
    %cst_11 = arith.constant dense<0.000000e+00> : vector<18x128xf32>
    %20 = tpu.matmul %18, %19, %cst_11 {dimension_numbers = #tpu.dot_dimension_numbers<[1], [0], [0], [1], [0, 0, 1, 1], [], []>} : vector<18x512xf32>, vector<512x128xf32>, vector<18x128xf32> -> vector<18x128xf32>
    %c0_12 = arith.constant 0 : index
    %c0_13 = arith.constant 0 : index
    %21 = vector.load %arg6[%c0_12, %c0_13] : memref<1x128xf32, #tpu.memory_space<vmem>>, vector<1x128xf32>
    %22 = vector.broadcast %21 : vector<1x128xf32> to vector<18x128xf32>
    %23 = arith.addf %20, %22 : vector<18x128xf32>
    %c0_14 = arith.constant 0 : index
    %c0_15 = arith.constant 0 : index
    %24 = vector.load %arg2[%c0_14, %c0_15] : memref<18x128xf32, #tpu.memory_space<vmem>>, vector<18x128xf32>
    %25 = arith.addf %23, %24 : vector<18x128xf32>
    %c0_16 = arith.constant 0 : index
    %c0_17 = arith.constant 0 : index
    %26 = vector.load %arg7[%c0_16, %c0_17] : memref<18x128xf32, #tpu.memory_space<vmem>>, vector<18x128xf32>
    tpu.vector_store %arg7[%c0_16, %c0_17], %25 {strides = array<i32>} : memref<18x128xf32, #tpu.memory_space<vmem>>, vector<18x128xf32>,
    return
  }
  func.func @transform_0(%arg0: i32) -> (i32, i32) {
    %c0_i32 = arith.constant 0 : i32
    %c0_i32_0 = arith.constant 0 : i32
    return %arg0, %c0_i32 : i32, i32
  }
  func.func @transform_1(%arg0: i32) -> (i32, i32) {
    %c0_i32 = arith.constant 0 : i32
    %c0_i32_0 = arith.constant 0 : i32
    return %arg0, %c0_i32 : i32, i32
  }
  func.func @transform_2(%arg0: i32) -> (i32, i32) {
    %c0_i32 = arith.constant 0 : i32
    %c0_i32_0 = arith.constant 0 : i32
    %c0_i32_1 = arith.constant 0 : i32
    return %c0_i32, %c0_i32_0 : i32, i32
  }
  func.func @transform_3(%arg0: i32) -> (i32, i32) {
    %c0_i32 = arith.constant 0 : i32
    %c0_i32_0 = arith.constant 0 : i32
    %c0_i32_1 = arith.constant 0 : i32
    return %c0_i32, %c0_i32_0 : i32, i32
  }
  func.func @transform_4(%arg0: i32) -> (i32, i32) {
    %c0_i32 = arith.constant 0 : i32
    %c0_i32_0 = arith.constant 0 : i32
    %c0_i32_1 = arith.constant 0 : i32
    return %c0_i32, %c0_i32_0 : i32, i32
  }
  func.func @transform_5(%arg0: i32) -> (i32, i32) {
    %c0_i32 = arith.constant 0 : i32
    %c0_i32_0 = arith.constant 0 : i32
    %c0_i32_1 = arith.constant 0 : i32
    return %c0_i32, %c0_i32_0 : i32, i32
  }
  func.func @transform_6(%arg0: i32) -> (i32, i32) {
    %c0_i32 = arith.constant 0 : i32
    %c0_i32_0 = arith.constant 0 : i32
    return %arg0, %c0_i32 : i32, i32
  }
}

module attributes {stable_mosaic.version = 11 : i64} {
  func.func @_mlp_resident_kernel(%arg0: i32, %arg1: memref<18x128xf32, #tpu.memory_space<vmem>>, %arg2: memref<18x128xf32, #tpu.memory_space<vmem>>, %arg3: memref<128x512xf32, #tpu.memory_space<vmem>>, %arg4: memref<1x512xf32, #tpu.memory_space<vmem>>, %arg5: memref<512x128xf32, #tpu.memory_space<vmem>>, %arg6: memref<1x128xf32, #tpu.memory_space<vmem>>, %arg7: memref<18x128xf32, #tpu.memory_space<vmem>>) attributes {dimension_semantics = [#tpu.dimension_semantics<parallel>], iteration_bounds = array<i64: 1>, scalar_prefetch = 0 : i64, scratch_operands = 0 : i64, tpu.core_type = #tpu.core_type<tc>, window_params = [{transform_indices = @transform_0, window_bounds = array<i64: 18, 128>}, {transform_indices = @transform_1, window_bounds = array<i64: 18, 128>}, {pipeline_mode = #tpu.pipeline_mode<synchronous>, transform_indices = @transform_2, window_bounds = array<i64: 128, 512>}, {pipeline_mode = #tpu.pipeline_mode<synchronous>, transform_indices = @transform_3, window_bounds = array<i64: 1, 512>}, {pipeline_mode = #tpu.pipeline_mode<synchronous>, transform_indices = @transform_4, window_bounds = array<i64: 512, 128>}, {pipeline_mode = #tpu.pipeline_mode<synchronous>, transform_indices = @transform_5, window_bounds = array<i64: 1, 128>}, {transform_indices = @transform_6, window_bounds = array<i64: 18, 128>}]} {
    %c0 = arith.constant 0 : index
    %c0_0 = arith.constant 0 : index
    %0 = vector.load %arg1[%c0, %c0_0] : memref<18x128xf32, #tpu.memory_space<vmem>>, vector<18x128xf32>
    %c0_1 = arith.constant 0 : index
    %c0_2 = arith.constant 0 : index
    %1 = vector.load %arg3[%c0_1, %c0_2] : memref<128x512xf32, #tpu.memory_space<vmem>>, vector<128x512xf32>
    %cst = arith.constant dense<0.000000e+00> : vector<18x512xf32>
    %2 = tpu.matmul %0, %1, %cst {dimension_numbers = #tpu.dot_dimension_numbers<[1], [0], [0], [1], [0, 0, 1, 1], [], []>} : vector<18x128xf32>, vector<128x512xf32>, vector<18x512xf32> -> vector<18x512xf32>
    %c0_3 = arith.constant 0 : index
    %c0_4 = arith.constant 0 : index
    %3 = vector.load %arg4[%c0_3, %c0_4] : memref<1x512xf32, #tpu.memory_space<vmem>>, vector<1x512xf32>
    %4 = vector.broadcast %3 : vector<1x512xf32> to vector<18x512xf32>
    %5 = arith.addf %2, %4 : vector<18x512xf32>
    %cst_5 = arith.constant 5.000000e-01 : f32
    %6 = vector.broadcast %cst_5 : f32 to vector<18x512xf32>
    %7 = arith.mulf %6, %5 : vector<18x512xf32>
    %cst_6 = arith.constant 4.471500e-02 : f32
    %8 = vector.broadcast %cst_6 : f32 to vector<18x512xf32>
    %9 = arith.mulf %8, %5 : vector<18x512xf32>
    %10 = arith.mulf %9, %5 : vector<18x512xf32>
    %11 = arith.mulf %10, %5 : vector<18x512xf32>
    %12 = arith.addf %5, %11 : vector<18x512xf32>
    %cst_7 = arith.constant 0.797884583 : f32
    %13 = vector.broadcast %cst_7 : f32 to vector<18x512xf32>
    %14 = arith.mulf %13, %12 : vector<18x512xf32>
    %15 = math.tanh %14 : vector<18x512xf32>
    %cst_8 = arith.constant 1.000000e+00 : f32
    %16 = vector.broadcast %cst_8 : f32 to vector<18x512xf32>
    %17 = arith.addf %16, %15 : vector<18x512xf32>
    %18 = arith.mulf %7, %17 : vector<18x512xf32>
    %c0_9 = arith.constant 0 : index
    %c0_10 = arith.constant 0 : index
    %19 = vector.load %arg5[%c0_9, %c0_10] : memref<512x128xf32, #tpu.memory_space<vmem>>, vector<512x128xf32>
    %cst_11 = arith.constant dense<0.000000e+00> : vector<18x128xf32>
    %20 = tpu.matmul %18, %19, %cst_11 {dimension_numbers = #tpu.dot_dimension_numbers<[1], [0], [0], [1], [0, 0, 1, 1], [], []>} : vector<18x512xf32>, vector<512x128xf32>, vector<18x128xf32> -> vector<18x128xf32>
    %c0_12 = arith.constant 0 : index
    %c0_13 = arith.constant 0 : index
    %21 = vector.load %arg6[%c0_12, %c0_13] : memref<1x128xf32, #tpu.memory_space<vmem>>, vector<1x128xf32>
    %22 = vector.broadcast %21 : vector<1x128xf32> to vector<18x128xf32>
    %23 = arith.addf %20, %22 : vector<18x128xf32>
    %c0_14 = arith.constant 0 : index
    %c0_15 = arith.constant 0 : index
    %24 = vector.load %arg2[%c0_14, %c0_15] : memref<18x128xf32, #tpu.memory_space<vmem>>, vector<18x128xf32>
    %25 = arith.addf %23, %24 : vector<18x128xf32>
    %c0_16 = arith.constant 0 : index
    %c0_17 = arith.constant 0 : index
    %26 = vector.load %arg7[%c0_16, %c0_17] : memref<18x128xf32, #tpu.memory_space<vmem>>, vector<18x128xf32>
    tpu.vector_store %arg7[%c0_16, %c0_17], %25 {strides = array<i32>} : memref<18x128xf32, #tpu.memory_space<vmem>>, vector<18x128xf32>,
    return
  }
  func.func @transform_0(%arg0: i32) -> (i32, i32) {
    %c0_i32 = arith.constant 0 : i32
    %c0_i32_0 = arith.constant 0 : i32
    return %arg0, %c0_i32 : i32, i32
  }
  func.func @transform_1(%arg0: i32) -> (i32, i32) {
    %c0_i32 = arith.constant 0 : i32
    %c0_i32_0 = arith.constant 0 : i32
    return %arg0, %c0_i32 : i32, i32
  }
  func.func @transform_2(%arg0: i32) -> (i32, i32) {
    %c0_i32 = arith.constant 0 : i32
    %c0_i32_0 = arith.constant 0 : i32
    %c0_i32_1 = arith.constant 0 : i32
    return %c0_i32, %c0_i32_0 : i32, i32
  }
  func.func @transform_3(%arg0: i32) -> (i32, i32) {
    %c0_i32 = arith.constant 0 : i32
    %c0_i32_0 = arith.constant 0 : i32
    %c0_i32_1 = arith.constant 0 : i32
    return %c0_i32, %c0_i32_0 : i32, i32
  }
  func.func @transform_4(%arg0: i32) -> (i32, i32) {
    %c0_i32 = arith.constant 0 : i32
    %c0_i32_0 = arith.constant 0 : i32
    %c0_i32_1 = arith.constant 0 : i32
    return %c0_i32, %c0_i32_0 : i32, i32
  }
  func.func @transform_5(%arg0: i32) -> (i32, i32) {
    %c0_i32 = arith.constant 0 : i32
    %c0_i32_0 = arith.constant 0 : i32
    %c0_i32_1 = arith.constant 0 : i32
    return %c0_i32, %c0_i32_0 : i32, i32
  }
  func.func @transform_6(%arg0: i32) -> (i32, i32) {
    %c0_i32 = arith.constant 0 : i32
    %c0_i32_0 = arith.constant 0 : i32
    return %arg0, %c0_i32 : i32, i32
  }
}

</mosaic_0001>

<llo_original>
// kernel: tpu_custom_call.1
$region0: #{tpu_custom_call.1}
  #allocation0 [shape = 'u32[]', space=smem, size = 0x4, offset = 0x4, fixed_abs, tag = 'smem constant byte address 0x4 - core index']
  #allocation1 [shape = 'u32[144,128]{1,0:T(1,128)}', space=vmem, size = 0x12000, scoped, tag = 'internal scratch']
  %s0 = inlined_call_operand.hbm [shape: f32[18,128], index: 0, kind: input, shape index: {}]
  %s1 = inlined_call_operand.hbm [shape: f32[18,128], index: 1, kind: input, shape index: {}]
  %s2 = inlined_call_operand.hbm [shape: f32[128,512], index: 2, kind: input, shape index: {}]
  %s3 = inlined_call_operand.vmem [shape: f32[1,512], index: 3, kind: input, shape index: {}]
  %s4 = inlined_call_operand.hbm [shape: f32[512,128], index: 4, kind: input, shape index: {}]
  %s5 = inlined_call_operand.vmem [shape: f32[1,128], index: 5, kind: input, shape index: {}]
  %s6 = inlined_call_operand.hbm [shape: f32[18,128], index: 6, kind: output, shape index: {}]
  %s7 = sld [smem:[#allocation0]]
  $region50: #{tpu_custom_call.1} parent=0
    _
  %s9 = ssub.s32 1, %s7
  %s10 = scalar_select 0, %s9, %s7
  $region1: #{tpu_custom_call.1} parent=0
    #allocation2 [shape = 'u8[12288]{0}', space=vmem, size = 0x3000, scoped, tag = 'input window, operand 0, single buffered']
    #allocation3 [shape = 's32[1]{0}', space=sflag, size = 0x4, scoped, tag = 'scoped memory for tpu_custom_call.1']
    #allocation4 [shape = 's32[1]{0}', space=sflag, size = 0x4, scoped, tag = 'scoped memory for tpu_custom_call.1']
    #allocation5 [shape = 'u8[12288]{0}', space=vmem, size = 0x3000, scoped, tag = 'input window, operand 1, single buffered']
    #allocation6 [shape = 's32[1]{0}', space=sflag, size = 0x4, scoped, tag = 'scoped memory for tpu_custom_call.1']
    #allocation7 [shape = 'u8[262144]{0}', space=vmem, size = 0x40000, scoped, tag = 'input window, operand 2, single buffered']
    #allocation8 [shape = 'u8[262144]{0}', space=vmem, size = 0x40000, scoped, tag = 'input window, operand 4, single buffered']
    #allocation9 [shape = 's32[1]{0}', space=sflag, size = 0x4, scoped, tag = 'scoped memory for tpu_custom_call.1']
    #allocation10 [shape = 'u8[12288]{0}', space=vmem, size = 0x3000, scoped, tag = 'output window, operand 0, single buffered']
    %11 = vsyncpa [#allocation3], 0
    %12 = vsyncpa [#allocation6], 0
    %13 = vsyncpa [#allocation9], 0
    %14 = vsyncpa [#allocation4], 0
    // Predicated region
    $region2: #{tpu_custom_call.1} parent=1 // pred_check
      _
    $region3: #{tpu_custom_call.1} parent=1 // pred_check_branch
      %16 = sbr.rel (0) target = $region5
    $region4: #{tpu_custom_call.1} parent=1 // pred_region
      %s18 = ssub.s32 384, 384
      %19 = vsyncadd [#allocation3], %s18
      %s20 = sshll.u32 [#allocation2], 4
      %s21 = int_to_ptr.vmem [resolvable:$true] %s20
      %26 = dma.hbm_to_vmem [thread:$0]  %s0, 384, %s21, [#allocation3], 128, 128, 8
    $region5: #{tpu_custom_call.1} parent=1 // pred_fallthru
      _
    // Predicated region
    $region6: #{tpu_custom_call.1} parent=1 // pred_check
      _
    $region7: #{tpu_custom_call.1} parent=1 // pred_check_branch
      %28 = sbr.rel (0) target = $region9
    $region8: #{tpu_custom_call.1} parent=1 // pred_region
      %s30 = ssub.s32 384, 384
      %31 = vsyncadd [#allocation6], %s30
      %s32 = sshll.u32 [#allocation5], 4
      %s33 = int_to_ptr.vmem [resolvable:$true] %s32
      %38 = dma.hbm_to_vmem [thread:$0]  %s1, 384, %s33, [#allocation6], 128, 128, 8
    $region9: #{tpu_custom_call.1} parent=1 // pred_fallthru
      _
    // Predicated region
    $region10: #{tpu_custom_call.1} parent=1 // pred_check
      _
    $region11: #{tpu_custom_call.1} parent=1 // pred_check_branch
      %40 = sbr.rel (0) target = $region13
    $region12: #{tpu_custom_call.1} parent=1 // pred_region
      %s42 = ssub.s32 8192, 8192
      %43 = vsyncadd [#allocation6], %s42
      %s44 = sshll.u32 [#allocation7], 4
      %s45 = int_to_ptr.vmem [resolvable:$true] %s44
      %50 = dma.hbm_to_vmem [thread:$0]  %s2, 8192, %s45, [#allocation6], 512, 512, 32
    $region13: #{tpu_custom_call.1} parent=1 // pred_fallthru
      _
    // Predicated region
    $region14: #{tpu_custom_call.1} parent=1 // pred_check
      _
    $region15: #{tpu_custom_call.1} parent=1 // pred_check_branch
      %52 = sbr.rel (0) target = $region17
    $region16: #{tpu_custom_call.1} parent=1 // pred_region
      _
    $region17: #{tpu_custom_call.1} parent=1 // pred_fallthru
      _
    // Predicated region
    $region18: #{tpu_custom_call.1} parent=1 // pred_check
      _
    $region19: #{tpu_custom_call.1} parent=1 // pred_check_branch
      %54 = sbr.rel (0) target = $region21
    $region20: #{tpu_custom_call.1} parent=1 // pred_region
      %s56 = ssub.s32 8192, 8192
      %57 = vsyncadd [#allocation9], %s56
      %s58 = sshll.u32 [#allocation8], 4
      %s59 = int_to_ptr.vmem [resolvable:$true] %s58
      %64 = dma.hbm_to_vmem [thread:$0]  %s4, 8192, %s59, [#allocation9], 128, 128, 8
    $region21: #{tpu_custom_call.1} parent=1 // pred_fallthru
      _
    // Predicated region
    $region22: #{tpu_custom_call.1} parent=1 // pred_check
      _
    $region23: #{tpu_custom_call.1} parent=1 // pred_check_branch
      %66 = sbr.rel (0) target = $region25
    $region24: #{tpu_custom_call.1} parent=1 // pred_region
      _
    $region25: #{tpu_custom_call.1} parent=1 // pred_fallthru
      _
    // Predicated region
    $region26: #{tpu_custom_call.1} parent=1 // pred_check
      _
    $region27: #{tpu_custom_call.1} parent=1 // pred_check_branch
      %68 = sbr.rel (0) target = $region29
    $region28: #{tpu_custom_call.1} parent=1 // pred_region
      %69 = dma.done [#allocation3], 384
    $region29: #{tpu_custom_call.1} parent=1 // pred_fallthru
      _
    // Predicated region
    $region30: #{tpu_custom_call.1} parent=1 // pred_check
      _
    $region31: #{tpu_custom_call.1} parent=1 // pred_check_branch
      %71 = sbr.rel (0) target = $region33
    $region32: #{tpu_custom_call.1} parent=1 // pred_region
      %72 = dma.done [#allocation6], 384
    $region33: #{tpu_custom_call.1} parent=1 // pred_fallthru
      _
    // Predicated region
    $region34: #{tpu_custom_call.1} parent=1 // pred_check
      _
    $region35: #{tpu_custom_call.1} parent=1 // pred_check_branch
      %74 = sbr.rel (0) target = $region37
    $region36: #{tpu_custom_call.1} parent=1 // pred_region
      %75 = dma.done [#allocation6], 8192
    $region37: #{tpu_custom_call.1} parent=1 // pred_fallthru
      _
    // Predicated region
    $region38: #{tpu_custom_call.1} parent=1 // pred_check
      _
    $region39: #{tpu_custom_call.1} parent=1 // pred_check_branch
      %77 = sbr.rel (0) target = $region41
    $region40: #{tpu_custom_call.1} parent=1 // pred_region
      %78 = dma.done [#allocation9], 8192
    $region41: #{tpu_custom_call.1} parent=1 // pred_fallthru
      _
    %v79 = vld [vmem:[#allocation2] sm:$0xff]
    %v80 = vld [vmem:[#allocation2 + $0x8] sm:$0xff]
    %v81 = vld [vmem:[#allocation2 + $0x10] sm:$0x3]
    %v82 = vld [vmem:[#allocation7] sm:$0xff]
    %v83 = vld [vmem:[#allocation7 + $0x8] sm:$0xff]
    %v84 = vld [vmem:[#allocation7 + $0x10] sm:$0xff]
    %v85 = vld [vmem:[#allocation7 + $0x18] sm:$0xff]
    %v86 = vld [vmem:[#allocation7 + $0x20] sm:$0xff]
    %v87 = vld [vmem:[#allocation7 + $0x28] sm:$0xff]
    %v88 = vld [vmem:[#allocation7 + $0x30] sm:$0xff]
    %v89 = vld [vmem:[#allocation7 + $0x38] sm:$0xff]
    %v90 = vld [vmem:[#allocation7 + $0x40] sm:$0xff]
    %v91 = vld [vmem:[#allocation7 + $0x48] sm:$0xff]
    %v92 = vld [vmem:[#allocation7 + $0x50] sm:$0xff]
    %v93 = vld [vmem:[#allocation7 + $0x58] sm:$0xff]
    %v94 = vld [vmem:[#allocation7 + $0x60] sm:$0xff]
    %v95 = vld [vmem:[#allocation7 + $0x68] sm:$0xff]
    %v96 = vld [vmem:[#allocation7 + $0x70] sm:$0xff]
    %v97 = vld [vmem:[#allocation7 + $0x78] sm:$0xff]
    %v98 = vld [vmem:[#allocation7 + $0x80] sm:$0xff]
    %v99 = vld [vmem:[#allocation7 + $0x88] sm:$0xff]
    %v100 = vld [vmem:[#allocation7 + $0x90] sm:$0xff]
    %v101 = vld [vmem:[#allocation7 + $0x98] sm:$0xff]
    %v102 = vld [vmem:[#allocation7 + $0xa0] sm:$0xff]
    %v103 = vld [vmem:[#allocation7 + $0xa8] sm:$0xff]
    %v104 = vld [vmem:[#allocation7 + $0xb0] sm:$0xff]
    %v105 = vld [vmem:[#allocation7 + $0xb8] sm:$0xff]
    %v106 = vld [vmem:[#allocation7 + $0xc0] sm:$0xff]
    %v107 = vld [vmem:[#allocation7 + $0xc8] sm:$0xff]
    %v108 = vld [vmem:[#allocation7 + $0xd0] sm:$0xff]
    %v109 = vld [vmem:[#allocation7 + $0xd8] sm:$0xff]
    %v110 = vld [vmem:[#allocation7 + $0xe0] sm:$0xff]
    %v111 = vld [vmem:[#allocation7 + $0xe8] sm:$0xff]
    %v112 = vld [vmem:[#allocation7 + $0xf0] sm:$0xff]
    %v113 = vld [vmem:[#allocation7 + $0xf8] sm:$0xff]
    %v114 = vld [vmem:[#allocation7 + $0x100] sm:$0xff]
    %v115 = vld [vmem:[#allocation7 + $0x108] sm:$0xff]
    %v116 = vld [vmem:[#allocation7 + $0x110] sm:$0xff]
    %v117 = vld [vmem:[#allocation7 + $0x118] sm:$0xff]
    %v118 = vld [vmem:[#allocation7 + $0x120] sm:$0xff]
    %v119 = vld [vmem:[#allocation7 + $0x128] sm:$0xff]
    %v120 = vld [vmem:[#allocation7 + $0x130] sm:$0xff]
    %v121 = vld [vmem:[#allocation7 + $0x138] sm:$0xff]
    %v122 = vld [vmem:[#allocation7 + $0x140] sm:$0xff]
    %v123 = vld [vmem:[#allocation7 + $0x148] sm:$0xff]
    %v124 = vld [vmem:[#allocation7 + $0x150] sm:$0xff]
    %v125 = vld [vmem:[#allocation7 + $0x158] sm:$0xff]
    %v126 = vld [vmem:[#allocation7 + $0x160] sm:$0xff]
    %v127 = vld [vmem:[#allocation7 + $0x168] sm:$0xff]
    %v128 = vld [vmem:[#allocation7 + $0x170] sm:$0xff]
    %v129 = vld [vmem:[#allocation7 + $0x178] sm:$0xff]
    %v130 = vld [vmem:[#allocation7 + $0x180] sm:$0xff]
    %v131 = vld [vmem:[#allocation7 + $0x188] sm:$0xff]
    %v132 = vld [vmem:[#allocation7 + $0x190] sm:$0xff]
    %v133 = vld [vmem:[#allocation7 + $0x198] sm:$0xff]
    %v134 = vld [vmem:[#allocation7 + $0x1a0] sm:$0xff]
    %v135 = vld [vmem:[#allocation7 + $0x1a8] sm:$0xff]
    %v136 = vld [vmem:[#allocation7 + $0x1b0] sm:$0xff]
    %v137 = vld [vmem:[#allocation7 + $0x1b8] sm:$0xff]
    %v138 = vld [vmem:[#allocation7 + $0x1c0] sm:$0xff]
    %v139 = vld [vmem:[#allocation7 + $0x1c8] sm:$0xff]
    %v140 = vld [vmem:[#allocation7 + $0x1d0] sm:$0xff]
    %v141 = vld [vmem:[#allocation7 + $0x1d8] sm:$0xff]
    %v142 = vld [vmem:[#allocation7 + $0x1e0] sm:$0xff]
    %v143 = vld [vmem:[#allocation7 + $0x1e8] sm:$0xff]
    %v144 = vld [vmem:[#allocation7 + $0x1f0] sm:$0xff]
    %v145 = vld [vmem:[#allocation7 + $0x1f8] sm:$0xff]
    %v146 = vld [vmem:[%s3] sm:$0xf]
    %v148 = vlaneseq
    %v149 = vshrl.u32 %v148, 7
    %v150 = vsub.s32 0, %v149
    %v151 = vrot.slane %v146, %v150
    %v152 = vlaneseq
    %v153 = vshrl.u32 %v152, 7
    %v154 = vsub.s32 1, %v153
    %v155 = vrot.slane %v146, %v154
    %v156 = vlaneseq
    %v157 = vshrl.u32 %v156, 7
    %v158 = vsub.s32 2, %v157
    %v159 = vrot.slane %v146, %v158
    %v160 = vlaneseq
    %v161 = vshrl.u32 %v160, 7
    %v162 = vsub.s32 3, %v161
    %v163 = vrot.slane %v146, %v162
    %168 = vmatprep.subr.mxu0 %v83
    %169 = vmatpush1.msra.mxu0 %v82
    %170 = vmatprep.subr.mxu0 %v87
    %171 = vmatpush1.msra.mxu0 %v86
    %172 = vmatprep.subr.mxu0 %v91
    %173 = vmatpush1.msra.mxu0 %v90
    %174 = vmatprep.subr.mxu0 %v95
    %175 = vmatpush1.msra.mxu0 %v94
    %176 = vmatprep.subr.mxu0 %v99
    %177 = vmatpush1.msra.mxu0 %v98
    %178 = vmatprep.subr.mxu0 %v103
    %179 = vmatpush1.msra.mxu0 %v102
    %180 = vmatprep.subr.mxu0 %v107
    %181 = vmatpush1.msra.mxu0 %v106
    %182 = vmatprep.subr.mxu0 %v111
    %183 = vmatpush1.msra.mxu0 %v110
    %184 = vmatprep.subr.mxu0 %v115
    %185 = vmatpush1.msra.mxu0 %v114
    %186 = vmatprep.subr.mxu0 %v119
    %187 = vmatpush1.msra.mxu0 %v118
    %188 = vmatprep.subr.mxu0 %v123
    %189 = vmatpush1.msra.mxu0 %v122
    %190 = vmatprep.subr.mxu0 %v127
    %191 = vmatpush1.msra.mxu0 %v126
    %192 = vmatprep.subr.mxu0 %v131
    %193 = vmatpush1.msra.mxu0 %v130
    %194 = vmatprep.subr.mxu0 %v135
    %195 = vmatpush1.msra.mxu0 %v134
    %196 = vmatprep.subr.mxu0 %v139
    %197 = vmatpush1.msra.mxu0 %v138
    %198 = vmatprep.subr.mxu0 %v143
    %199 = vmatpush1.msra.mxu0 %v142
    %200 = vmatprep.subr.mxu0 0.0
    %201 = vmatpush1.msra.mxu0 0.0
    %202 = vmatprep.subr.mxu0 0.0
    %203 = vmatpush1.msra.mxu0 0.0
    %204 = vmatprep.subr.mxu0 0.0
    %205 = vmatpush1.msra.mxu0 0.0
    %206 = vmatprep.subr.mxu0 0.0
    %207 = vmatpush1.msra.mxu0 0.0
    %208 = vmatprep.subr.mxu0 0.0
    %209 = vmatpush1.msra.mxu0 0.0
    %210 = vmatprep.subr.mxu0 0.0
    %211 = vmatpush1.msra.mxu0 0.0
    %212 = vmatprep.subr.mxu0 0.0
    %213 = vmatpush1.msra.mxu0 0.0
    %214 = vmatprep.subr.mxu0 0.0
    %215 = vmatpush1.msra.mxu0 0.0
    %216 = vmatprep.subr.mxu0 0.0
    %217 = vmatpush1.msra.mxu0 0.0
    %218 = vmatprep.subr.mxu0 0.0
    %219 = vmatpush1.msra.mxu0 0.0
    %220 = vmatprep.subr.mxu0 0.0
    %221 = vmatpush1.msra.mxu0 0.0
    %222 = vmatprep.subr.mxu0 0.0
    %223 = vmatpush1.msra.mxu0 0.0
    %224 = vmatprep.subr.mxu0 0.0
    %225 = vmatpush1.msra.mxu0 0.0
    %226 = vmatprep.subr.mxu0 0.0
    %227 = vmatpush1.msra.mxu0 0.0
    %228 = vmatprep.subr.mxu0 0.0
    %229 = vmatpush1.msra.mxu0 0.0
    %230 = vmatprep.subr.mxu0 0.0
    %231 = vmatpush1.msra.mxu0 0.0
    %232 = vmatprep.mubr.f32.mxu0 0.0
    %233 = vmatmul.mubr.f32.gmra.mrb[0].mxu0 %v79
    %v234 = vpop.f32.mrb[0].mxu0
    %v235 = vadd.f32 %v151, %v234
    %v236 = vpop.f32.mrb[0].mxu0
    %v237 = vadd.f32 %v155, %v236
    %238 = vmatprep.mubr.f32.mxu0 0.0
    %239 = vmatmul.mubr.f32.gmra.mrb[0].mxu0 %v80
    %v240 = vpop.f32.mrb[0].mxu0
    %v241 = vadd.f32 %v151, %v240
    %v242 = vpop.f32.mrb[0].mxu0
    %v243 = vadd.f32 %v155, %v242
    %244 = vmatprep.mubr.f32.mxu0 0.0
    %245 = vmatmul.mubr.f32.gmra.mrb[0].mxu0 %v81
    %v246 = vpop.f32.mrb[0].mxu0
    %v247 = vadd.f32 %v151, %v246
    %v248 = vpop.f32.mrb[0].mxu0
    %v249 = vadd.f32 %v155, %v248
    %250 = vdwg.mxu0
    %251 = vmatprep.subr.mxu0 %v85
    %252 = vmatpush1.msra.mxu0 %v84
    %253 = vmatprep.subr.mxu0 %v89
    %254 = vmatpush1.msra.mxu0 %v88
    %255 = vmatprep.subr.mxu0 %v93
    %256 = vmatpush1.msra.mxu0 %v92
    %257 = vmatprep.subr.mxu0 %v97
    %258 = vmatpush1.msra.mxu0 %v96
    %259 = vmatprep.subr.mxu0 %v101
    %260 = vmatpush1.msra.mxu0 %v100
    %261 = vmatprep.subr.mxu0 %v105
    %262 = vmatpush1.msra.mxu0 %v104
    %263 = vmatprep.subr.mxu0 %v109
    %264 = vmatpush1.msra.mxu0 %v108
    %265 = vmatprep.subr.mxu0 %v113
    %266 = vmatpush1.msra.mxu0 %v112
    %267 = vmatprep.subr.mxu0 %v117
    %268 = vmatpush1.msra.mxu0 %v116
    %269 = vmatprep.subr.mxu0 %v121
    %270 = vmatpush1.msra.mxu0 %v120
    %271 = vmatprep.subr.mxu0 %v125
    %272 = vmatpush1.msra.mxu0 %v124
    %273 = vmatprep.subr.mxu0 %v129
    %274 = vmatpush1.msra.mxu0 %v128
    %275 = vmatprep.subr.mxu0 %v133
    %276 = vmatpush1.msra.mxu0 %v132
    %277 = vmatprep.subr.mxu0 %v137
    %278 = vmatpush1.msra.mxu0 %v136
    %279 = vmatprep.subr.mxu0 %v141
    %280 = vmatpush1.msra.mxu0 %v140
    %281 = vmatprep.subr.mxu0 %v145
    %282 = vmatpush1.msra.mxu0 %v144
    %283 = vmatprep.subr.mxu0 0.0
    %284 = vmatpush1.msra.mxu0 0.0
    %285 = vmatprep.subr.mxu0 0.0
    %286 = vmatpush1.msra.mxu0 0.0
    %287 = vmatprep.subr.mxu0 0.0
    %288 = vmatpush1.msra.mxu0 0.0
    %289 = vmatprep.subr.mxu0 0.0
    %290 = vmatpush1.msra.mxu0 0.0
    %291 = vmatprep.subr.mxu0 0.0
    %292 = vmatpush1.msra.mxu0 0.0
    %293 = vmatprep.subr.mxu0 0.0
    %294 = vmatpush1.msra.mxu0 0.0
    %295 = vmatprep.subr.mxu0 0.0
    %296 = vmatpush1.msra.mxu0 0.0
    %297 = vmatprep.subr.mxu0 0.0
    %298 = vmatpush1.msra.mxu0 0.0
    %299 = vmatprep.subr.mxu0 0.0
    %300 = vmatpush1.msra.mxu0 0.0
    %301 = vmatprep.subr.mxu0 0.0
    %302 = vmatpush1.msra.mxu0 0.0
    %303 = vmatprep.subr.mxu0 0.0
    %304 = vmatpush1.msra.mxu0 0.0
    %305 = vmatprep.subr.mxu0 0.0
    %306 = vmatpush1.msra.mxu0 0.0
    %307 = vmatprep.subr.mxu0 0.0
    %308 = vmatpush1.msra.mxu0 0.0
    %309 = vmatprep.subr.mxu0 0.0
    %310 = vmatpush1.msra.mxu0 0.0
    %311 = vmatprep.subr.mxu0 0.0
    %312 = vmatpush1.msra.mxu0 0.0
    %313 = vmatprep.subr.mxu0 0.0
    %314 = vmatpush1.msra.mxu0 0.0
    %315 = vmatprep.mubr.f32.mxu0 0.0
    %316 = vmatmul.mubr.f32.gmra.mrb[0].mxu0 %v79
    %v317 = vpop.f32.mrb[0].mxu0
    %v318 = vadd.f32 %v159, %v317
    %v319 = vpop.f32.mrb[0].mxu0
    %v320 = vadd.f32 %v163, %v319
    %321 = vmatprep.mubr.f32.mxu0 0.0
    %322 = vmatmul.mubr.f32.gmra.mrb[0].mxu0 %v80
    %v323 = vpop.f32.mrb[0].mxu0
    %v324 = vadd.f32 %v159, %v323
    %v325 = vpop.f32.mrb[0].mxu0
    %v326 = vadd.f32 %v163, %v325
    %327 = vmatprep.mubr.f32.mxu0 0.0
    %328 = vmatmul.mubr.f32.gmra.mrb[0].mxu0 %v81
    %v329 = vpop.f32.mrb[0].mxu0
    %v330 = vadd.f32 %v159, %v329
    %v331 = vpop.f32.mrb[0].mxu0
    %v332 = vadd.f32 %v163, %v331
    %333 = vdwg.mxu0
    %v334 = vmul.f32 %v235, 0.5
    %v335 = vmul.f32 %v237, 0.5
    %v336 = vmul.f32 %v318, 0.5
    %v337 = vmul.f32 %v320, 0.5
    %v338 = vmul.f32 %v241, 0.5
    %v339 = vmul.f32 %v243, 0.5
    %v340 = vmul.f32 %v324, 0.5
    %v341 = vmul.f32 %v326, 0.5
    %v342 = vmul.f32 %v247, 0.5
    %v343 = vmul.f32 %v249, 0.5
    %v344 = vmul.f32 %v330, 0.5
    %v345 = vmul.f32 %v332, 0.5
    %v346 = vmul.f32 %v235, 0.044715
    %v347 = vmul.f32 %v237, 0.044715
    %v348 = vmul.f32 %v318, 0.044715
    %v349 = vmul.f32 %v320, 0.044715
    %v350 = vmul.f32 %v241, 0.044715
    %v351 = vmul.f32 %v243, 0.044715
    %v352 = vmul.f32 %v324, 0.044715
    %v353 = vmul.f32 %v326, 0.044715
    %v354 = vmul.f32 %v247, 0.044715
    %v355 = vmul.f32 %v249, 0.044715
    %v356 = vmul.f32 %v330, 0.044715
    %v357 = vmul.f32 %v332, 0.044715
    %v358 = vmul.f32 %v346, %v235
    %v359 = vmul.f32 %v347, %v237
    %v360 = vmul.f32 %v348, %v318
    %v361 = vmul.f32 %v349, %v320
    %v362 = vmul.f32 %v350, %v241
    %v363 = vmul.f32 %v351, %v243
    %v364 = vmul.f32 %v352, %v324
    %v365 = vmul.f32 %v353, %v326
    %v366 = vmul.f32 %v354, %v247
    %v367 = vmul.f32 %v355, %v249
    %v368 = vmul.f32 %v356, %v330
    %v369 = vmul.f32 %v357, %v332
    %v370 = vmul.f32 %v358, %v235
    %v371 = vmul.f32 %v359, %v237
    %v372 = vmul.f32 %v360, %v318
    %v373 = vmul.f32 %v361, %v320
    %v374 = vmul.f32 %v362, %v241
    %v375 = vmul.f32 %v363, %v243
    %v376 = vmul.f32 %v364, %v324
    %v377 = vmul.f32 %v365, %v326
    %v378 = vmul.f32 %v366, %v247
    %v379 = vmul.f32 %v367, %v249
    %v380 = vmul.f32 %v368, %v330
    %v381 = vmul.f32 %v369, %v332
    %v382 = vadd.f32 %v235, %v370
    %v383 = vadd.f32 %v237, %v371
    %v384 = vadd.f32 %v318, %v372
    %v385 = vadd.f32 %v320, %v373
    %v386 = vadd.f32 %v241, %v374
    %v387 = vadd.f32 %v243, %v375
    %v388 = vadd.f32 %v324, %v376
    %v389 = vadd.f32 %v326, %v377
    %v390 = vadd.f32 %v247, %v378
    %v391 = vadd.f32 %v249, %v379
    %v392 = vadd.f32 %v330, %v380
    %v393 = vadd.f32 %v332, %v381
    %v394 = vmul.f32 %v382, 0.7978846
    %v395 = vmul.f32 %v383, 0.7978846
    %v396 = vmul.f32 %v384, 0.7978846
    %v397 = vmul.f32 %v385, 0.7978846
    %v398 = vmul.f32 %v386, 0.7978846
    %v399 = vmul.f32 %v387, 0.7978846
    %v400 = vmul.f32 %v388, 0.7978846
    %v401 = vmul.f32 %v389, 0.7978846
    %v402 = vmul.f32 %v390, 0.7978846
    %v403 = vmul.f32 %v391, 0.7978846
    %v404 = vmul.f32 %v392, 0.7978846
    %v405 = vmul.f32 %v393, 0.7978846
    %v406 = vtanh.pop %v394
    %v407 = vtanh.pop %v395
    %v408 = vtanh.pop %v396
    %v409 = vtanh.pop %v397
    %v410 = vtanh.pop %v398
    %v411 = vtanh.pop %v399
    %v412 = vtanh.pop %v400
    %v413 = vtanh.pop %v401
    %v414 = vtanh.pop %v402
    %v415 = vtanh.pop %v403
    %v416 = vtanh.pop %v404
    %v417 = vtanh.pop %v405
    %v418 = vadd.f32 %v406, 1.0
    %v419 = vadd.f32 %v407, 1.0
    %v420 = vadd.f32 %v408, 1.0
    %v421 = vadd.f32 %v409, 1.0
    %v422 = vadd.f32 %v410, 1.0
    %v423 = vadd.f32 %v411, 1.0
    %v424 = vadd.f32 %v412, 1.0
    %v425 = vadd.f32 %v413, 1.0
    %v426 = vadd.f32 %v414, 1.0
    %v427 = vadd.f32 %v415, 1.0
    %v428 = vadd.f32 %v416, 1.0
    %v429 = vadd.f32 %v417, 1.0
    %v430 = vmul.f32 %v334, %v418
    %v431 = vmul.f32 %v335, %v419
    %v432 = vmul.f32 %v336, %v420
    %v433 = vmul.f32 %v337, %v421
    %v434 = vmul.f32 %v338, %v422
    %v435 = vmul.f32 %v339, %v423
    %v436 = vmul.f32 %v340, %v424
    %v437 = vmul.f32 %v341, %v425
    %v438 = vmul.f32 %v342, %v426
    %v439 = vmul.f32 %v343, %v427
    %v440 = vmul.f32 %v344, %v428
    %v441 = vmul.f32 %v345, %v429
    %v442 = vld [vmem:[#allocation8] sm:$0xff]
    %v443 = vld [vmem:[#allocation8 + $0x8] sm:$0xff]
    %v444 = vld [vmem:[#allocation8 + $0x10] sm:$0xff]
    %v445 = vld [vmem:[#allocation8 + $0x18] sm:$0xff]
    %v446 = vld [vmem:[#allocation8 + $0x20] sm:$0xff]
    %v447 = vld [vmem:[#allocation8 + $0x28] sm:$0xff]
    %v448 = vld [vmem:[#allocation8 + $0x30] sm:$0xff]
    %v449 = vld [vmem:[#allocation8 + $0x38] sm:$0xff]
    %v450 = vld [vmem:[#allocation8 + $0x40] sm:$0xff]
    %v451 = vld [vmem:[#allocation8 + $0x48] sm:$0xff]
    %v452 = vld [vmem:[#allocation8 + $0x50] sm:$0xff]
    %v453 = vld [vmem:[#allocation8 + $0x58] sm:$0xff]
    %v454 = vld [vmem:[#allocation8 + $0x60] sm:$0xff]
    %v455 = vld [vmem:[#allocation8 + $0x68] sm:$0xff]
    %v456 = vld [vmem:[#allocation8 + $0x70] sm:$0xff]
    %v457 = vld [vmem:[#allocation8 + $0x78] sm:$0xff]
    %v458 = vld [vmem:[#allocation8 + $0x80] sm:$0xff]
    %v459 = vld [vmem:[#allocation8 + $0x88] sm:$0xff]
    %v460 = vld [vmem:[#allocation8 + $0x90] sm:$0xff]
    %v461 = vld [vmem:[#allocation8 + $0x98] sm:$0xff]
    %v462 = vld [vmem:[#allocation8 + $0xa0] sm:$0xff]
    %v463 = vld [vmem:[#allocation8 + $0xa8] sm:$0xff]
    %v464 = vld [vmem:[#allocation8 + $0xb0] sm:$0xff]
    %v465 = vld [vmem:[#allocation8 + $0xb8] sm:$0xff]
    %v466 = vld [vmem:[#allocation8 + $0xc0] sm:$0xff]
    %v467 = vld [vmem:[#allocation8 + $0xc8] sm:$0xff]
    %v468 = vld [vmem:[#allocation8 + $0xd0] sm:$0xff]
    %v469 = vld [vmem:[#allocation8 + $0xd8] sm:$0xff]
    %v470 = vld [vmem:[#allocation8 + $0xe0] sm:$0xff]
    %v471 = vld [vmem:[#allocation8 + $0xe8] sm:$0xff]
    %v472 = vld [vmem:[#allocation8 + $0xf0] sm:$0xff]
    %v473 = vld [vmem:[#allocation8 + $0xf8] sm:$0xff]
    %v474 = vld [vmem:[#allocation8 + $0x100] sm:$0xff]
    %v475 = vld [vmem:[#allocation8 + $0x108] sm:$0xff]
    %v476 = vld [vmem:[#allocation8 + $0x110] sm:$0xff]
    %v477 = vld [vmem:[#allocation8 + $0x118] sm:$0xff]
    %v478 = vld [vmem:[#allocation8 + $0x120] sm:$0xff]
    %v479 = vld [vmem:[#allocation8 + $0x128] sm:$0xff]
    %v480 = vld [vmem:[#allocation8 + $0x130] sm:$0xff]
    %v481 = vld [vmem:[#allocation8 + $0x138] sm:$0xff]
    %v482 = vld [vmem:[#allocation8 + $0x140] sm:$0xff]
    %v483 = vld [vmem:[#allocation8 + $0x148] sm:$0xff]
    %v484 = vld [vmem:[#allocation8 + $0x150] sm:$0xff]
    %v485 = vld [vmem:[#allocation8 + $0x158] sm:$0xff]
    %v486 = vld [vmem:[#allocation8 + $0x160] sm:$0xff]
    %v487 = vld [vmem:[#allocation8 + $0x168] sm:$0xff]
    %v488 = vld [vmem:[#allocation8 + $0x170] sm:$0xff]
    %v489 = vld [vmem:[#allocation8 + $0x178] sm:$0xff]
    %v490 = vld [vmem:[#allocation8 + $0x180] sm:$0xff]
    %v491 = vld [vmem:[#allocation8 + $0x188] sm:$0xff]
    %v492 = vld [vmem:[#allocation8 + $0x190] sm:$0xff]
    %v493 = vld [vmem:[#allocation8 + $0x198] sm:$0xff]
    %v494 = vld [vmem:[#allocation8 + $0x1a0] sm:$0xff]
    %v495 = vld [vmem:[#allocation8 + $0x1a8] sm:$0xff]
    %v496 = vld [vmem:[#allocation8 + $0x1b0] sm:$0xff]
    %v497 = vld [vmem:[#allocation8 + $0x1b8] sm:$0xff]
    %v498 = vld [vmem:[#allocation8 + $0x1c0] sm:$0xff]
    %v499 = vld [vmem:[#allocation8 + $0x1c8] sm:$0xff]
    %v500 = vld [vmem:[#allocation8 + $0x1d0] sm:$0xff]
    %v501 = vld [vmem:[#allocation8 + $0x1d8] sm:$0xff]
    %v502 = vld [vmem:[#allocation8 + $0x1e0] sm:$0xff]
    %v503 = vld [vmem:[#allocation8 + $0x1e8] sm:$0xff]
    %v504 = vld [vmem:[#allocation8 + $0x1f0] sm:$0xff]
    %v505 = vld [vmem:[#allocation8 + $0x1f8] sm:$0xff]
    %v506 = vld [vmem:[%s5] sm:$0x1]
    %v508 = vlaneseq
    %v509 = vshrl.u32 %v508, 7
    %v510 = vsub.s32 0, %v509
    %v511 = vrot.slane %v506, %v510
    %513 = vmatprep.subr.mxu0 0.0
    %514 = vmatpush1.msra.mxu0 %v442
    %515 = vmatprep.subr.mxu0 0.0
    %516 = vmatpush1.msra.mxu0 %v443
    %517 = vmatprep.subr.mxu0 0.0
    %518 = vmatpush1.msra.mxu0 %v444
    %519 = vmatprep.subr.mxu0 0.0
    %520 = vmatpush1.msra.mxu0 %v445
    %521 = vmatprep.subr.mxu0 0.0
    %522 = vmatpush1.msra.mxu0 %v446
    %523 = vmatprep.subr.mxu0 0.0
    %524 = vmatpush1.msra.mxu0 %v447
    %525 = vmatprep.subr.mxu0 0.0
    %526 = vmatpush1.msra.mxu0 %v448
    %527 = vmatprep.subr.mxu0 0.0
    %528 = vmatpush1.msra.mxu0 %v449
    %529 = vmatprep.subr.mxu0 0.0
    %530 = vmatpush1.msra.mxu0 %v450
    %531 = vmatprep.subr.mxu0 0.0
    %532 = vmatpush1.msra.mxu0 %v451
    %533 = vmatprep.subr.mxu0 0.0
    %534 = vmatpush1.msra.mxu0 %v452
    %535 = vmatprep.subr.mxu0 0.0
    %536 = vmatpush1.msra.mxu0 %v453
    %537 = vmatprep.subr.mxu0 0.0
    %538 = vmatpush1.msra.mxu0 %v454
    %539 = vmatprep.subr.mxu0 0.0
    %540 = vmatpush1.msra.mxu0 %v455
    %541 = vmatprep.subr.mxu0 0.0
    %542 = vmatpush1.msra.mxu0 %v456
    %543 = vmatprep.subr.mxu0 0.0
    %544 = vmatpush1.msra.mxu0 %v457
    %545 = vmatprep.subr.mxu0 0.0
    %546 = vmatpush1.msra.mxu0 %v458
    %547 = vmatprep.subr.mxu0 0.0
    %548 = vmatpush1.msra.mxu0 %v459
    %549 = vmatprep.subr.mxu0 0.0
    %550 = vmatpush1.msra.mxu0 %v460
    %551 = vmatprep.subr.mxu0 0.0
    %552 = vmatpush1.msra.mxu0 %v461
    %553 = vmatprep.subr.mxu0 0.0
    %554 = vmatpush1.msra.mxu0 %v462
    %555 = vmatprep.subr.mxu0 0.0
    %556 = vmatpush1.msra.mxu0 %v463
    %557 = vmatprep.subr.mxu0 0.0
    %558 = vmatpush1.msra.mxu0 %v464
    %559 = vmatprep.subr.mxu0 0.0
    %560 = vmatpush1.msra.mxu0 %v465
    %561 = vmatprep.subr.mxu0 0.0
    %562 = vmatpush1.msra.mxu0 %v466
    %563 = vmatprep.subr.mxu0 0.0
    %564 = vmatpush1.msra.mxu0 %v467
    %565 = vmatprep.subr.mxu0 0.0
    %566 = vmatpush1.msra.mxu0 %v468
    %567 = vmatprep.subr.mxu0 0.0
    %568 = vmatpush1.msra.mxu0 %v469
    %569 = vmatprep.subr.mxu0 0.0
    %570 = vmatpush1.msra.mxu0 %v470
    %571 = vmatprep.subr.mxu0 0.0
    %572 = vmatpush1.msra.mxu0 %v471
    %573 = vmatprep.subr.mxu0 0.0
    %574 = vmatpush1.msra.mxu0 %v472
    %575 = vmatprep.subr.mxu0 0.0
    %576 = vmatpush1.msra.mxu0 %v473
    %577 = vmatprep.mubr.f32.mxu0 %v431
    %578 = vmatmul.mubr.f32.gmra.mrb[0].mxu0 %v430
    %v579 = vpop.f32.mrb[0].mxu0
    %v580 = vadd.f32 %v511, %v579
    %v581 = vpop.f32.mrb[0].mxu0
    %582 = vmatprep.mubr.f32.mxu0 %v435
    %583 = vmatmul.mubr.f32.gmra.mrb[0].mxu0 %v434
    %v584 = vpop.f32.mrb[0].mxu0
    %v585 = vadd.f32 %v511, %v584
    %v586 = vpop.f32.mrb[0].mxu0
    %587 = vmatprep.mubr.f32.mxu0 %v439
    %588 = vmatmul.mubr.f32.gmra.mrb[0].mxu0 %v438
    %v589 = vpop.f32.mrb[0].mxu0
    %v590 = vadd.f32 %v511, %v589
    %v591 = vpop.f32.mrb[0].mxu0
    %592 = vdwg.mxu0
    %593 = vmatprep.subr.mxu0 0.0
    %594 = vmatpush1.msra.mxu0 %v474
    %595 = vmatprep.subr.mxu0 0.0
    %596 = vmatpush1.msra.mxu0 %v475
    %597 = vmatprep.subr.mxu0 0.0
    %598 = vmatpush1.msra.mxu0 %v476
    %599 = vmatprep.subr.mxu0 0.0
    %600 = vmatpush1.msra.mxu0 %v477
    %601 = vmatprep.subr.mxu0 0.0
    %602 = vmatpush1.msra.mxu0 %v478
    %603 = vmatprep.subr.mxu0 0.0
    %604 = vmatpush1.msra.mxu0 %v479
    %605 = vmatprep.subr.mxu0 0.0
    %606 = vmatpush1.msra.mxu0 %v480
    %607 = vmatprep.subr.mxu0 0.0
    %608 = vmatpush1.msra.mxu0 %v481
    %609 = vmatprep.subr.mxu0 0.0
    %610 = vmatpush1.msra.mxu0 %v482
    %611 = vmatprep.subr.mxu0 0.0
    %612 = vmatpush1.msra.mxu0 %v483
    %613 = vmatprep.subr.mxu0 0.0
    %614 = vmatpush1.msra.mxu0 %v484
    %615 = vmatprep.subr.mxu0 0.0
    %616 = vmatpush1.msra.mxu0 %v485
    %617 = vmatprep.subr.mxu0 0.0
    %618 = vmatpush1.msra.mxu0 %v486
    %619 = vmatprep.subr.mxu0 0.0
    %620 = vmatpush1.msra.mxu0 %v487
    %621 = vmatprep.subr.mxu0 0.0
    %622 = vmatpush1.msra.mxu0 %v488
    %623 = vmatprep.subr.mxu0 0.0
    %624 = vmatpush1.msra.mxu0 %v489
    %625 = vmatprep.subr.mxu0 0.0
    %626 = vmatpush1.msra.mxu0 %v490
    %627 = vmatprep.subr.mxu0 0.0
    %628 = vmatpush1.msra.mxu0 %v491
    %629 = vmatprep.subr.mxu0 0.0
    %630 = vmatpush1.msra.mxu0 %v492
    %631 = vmatprep.subr.mxu0 0.0
    %632 = vmatpush1.msra.mxu0 %v493
    %633 = vmatprep.subr.mxu0 0.0
    %634 = vmatpush1.msra.mxu0 %v494
    %635 = vmatprep.subr.mxu0 0.0
    %636 = vmatpush1.msra.mxu0 %v495
    %637 = vmatprep.subr.mxu0 0.0
    %638 = vmatpush1.msra.mxu0 %v496
    %639 = vmatprep.subr.mxu0 0.0
    %640 = vmatpush1.msra.mxu0 %v497
    %641 = vmatprep.subr.mxu0 0.0
    %642 = vmatpush1.msra.mxu0 %v498
    %643 = vmatprep.subr.mxu0 0.0
    %644 = vmatpush1.msra.mxu0 %v499
    %645 = vmatprep.subr.mxu0 0.0
    %646 = vmatpush1.msra.mxu0 %v500
    %647 = vmatprep.subr.mxu0 0.0
    %648 = vmatpush1.msra.mxu0 %v501
    %649 = vmatprep.subr.mxu0 0.0
    %650 = vmatpush1.msra.mxu0 %v502
    %651 = vmatprep.subr.mxu0 0.0
    %652 = vmatpush1.msra.mxu0 %v503
    %653 = vmatprep.subr.mxu0 0.0
    %654 = vmatpush1.msra.mxu0 %v504
    %655 = vmatprep.subr.mxu0 0.0
    %656 = vmatpush1.msra.mxu0 %v505
    %657 = vmatprep.mubr.f32.mxu0 %v433
    %658 = vmatmul.mubr.f32.gmra.mrb[0].mxu0 %v432
    %v659 = vpop.f32.mrb[0].mxu0
    %v660 = vadd.f32 %v580, %v659
    %v661 = vpop.f32.mrb[0].mxu0
    %662 = vmatprep.mubr.f32.mxu0 %v437
    %663 = vmatmul.mubr.f32.gmra.mrb[0].mxu0 %v436
    %v664 = vpop.f32.mrb[0].mxu0
    %v665 = vadd.f32 %v585, %v664
    %v666 = vpop.f32.mrb[0].mxu0
    %667 = vmatprep.mubr.f32.mxu0 %v441
    %668 = vmatmul.mubr.f32.gmra.mrb[0].mxu0 %v440
    %v669 = vpop.f32.mrb[0].mxu0
    %v670 = vadd.f32 %v590, %v669
    %v671 = vpop.f32.mrb[0].mxu0
    %672 = vdwg.mxu0
    %v673 = vld [vmem:[#allocation5] sm:$0xff]
    %v674 = vld [vmem:[#allocation5 + $0x8] sm:$0xff]
    %v675 = vld [vmem:[#allocation5 + $0x10] sm:$0x3]
    %v676 = vadd.f32 %v660, %v673
    %v677 = vadd.f32 %v665, %v674
    %v678 = vadd.f32 %v670, %v675
    %679 = vst [vmem:[#allocation10] sm:$0xff] %v676
    %680 = vst [vmem:[#allocation10 + $0x8] sm:$0xff] %v677
    %681 = vst [vmem:[#allocation10 + $0x10] sm:$0x3] %v678
    // Predicated region
    $region42: #{tpu_custom_call.1} parent=1 // pred_check
      _
    $region43: #{tpu_custom_call.1} parent=1 // pred_check_branch
      %683 = sbr.rel (0) target = $region45
    $region44: #{tpu_custom_call.1} parent=1 // pred_region
      %s685 = ssub.s32 384, 384
      %686 = vsyncadd [#allocation4], %s685
      %s687 = sshll.u32 [#allocation10], 4
      %s688 = int_to_ptr.vmem [resolvable:$true] %s687
      %693 = dma.vmem_to_hbm [thread:$0]  %s688, 384, %s6, [#allocation4], 128, 128, 8
    $region45: #{tpu_custom_call.1} parent=1 // pred_fallthru
      _
    // Predicated region
    $region46: #{tpu_custom_call.1} parent=1 // pred_check
      _
    $region47: #{tpu_custom_call.1} parent=1 // pred_check_branch
      %695 = sbr.rel (0) target = $region49
    $region48: #{tpu_custom_call.1} parent=1 // pred_region
      %696 = dma.done [#allocation4], 384
    $region49: #{tpu_custom_call.1} parent=1 // pred_fallthru
      _
    %697 = vsyncpa [#allocation3], 1
    %698 = vsyncpa [#allocation6], 1
    %699 = vsyncpa [#allocation9], 1
    %700 = vsyncpa [#allocation4], 1

// kernel: tpu_custom_call.1
$region0: #{tpu_custom_call.1}
  #allocation0 [shape = 'u32[]', space=smem, size = 0x4, offset = 0x4, fixed_abs, tag = 'smem constant byte address 0x4 - core index']
  #allocation1 [shape = 'u32[144,128]{1,0:T(1,128)}', space=vmem, size = 0x12000, scoped, tag = 'internal scratch']
  %s0 = inlined_call_operand.hbm [shape: f32[18,128], index: 0, kind: input, shape index: {}]
  %s1 = inlined_call_operand.hbm [shape: f32[18,128], index: 1, kind: input, shape index: {}]
  %s2 = inlined_call_operand.hbm [shape: f32[128,512], index: 2, kind: input, shape index: {}]
  %s3 = inlined_call_operand.vmem [shape: f32[1,512], index: 3, kind: input, shape index: {}]
  %s4 = inlined_call_operand.hbm [shape: f32[512,128], index: 4, kind: input, shape index: {}]
  %s5 = inlined_call_operand.vmem [shape: f32[1,128], index: 5, kind: input, shape index: {}]
  %s6 = inlined_call_operand.hbm [shape: f32[18,128], index: 6, kind: output, shape index: {}]
  %s7 = sld [smem:[#allocation0]]
  $region50: #{tpu_custom_call.1} parent=0
    _
  %s9 = ssub.s32 1, %s7
  %s10 = scalar_select 0, %s9, %s7
  $region1: #{tpu_custom_call.1} parent=0
    #allocation2 [shape = 'u8[12288]{0}', space=vmem, size = 0x3000, scoped, tag = 'input window, operand 0, single buffered']
    #allocation3 [shape = 's32[1]{0}', space=sflag, size = 0x4, scoped, tag = 'scoped memory for tpu_custom_call.1']
    #allocation4 [shape = 's32[1]{0}', space=sflag, size = 0x4, scoped, tag = 'scoped memory for tpu_custom_call.1']
    #allocation5 [shape = 'u8[12288]{0}', space=vmem, size = 0x3000, scoped, tag = 'input window, operand 1, single buffered']
    #allocation6 [shape = 's32[1]{0}', space=sflag, size = 0x4, scoped, tag = 'scoped memory for tpu_custom_call.1']
    #allocation7 [shape = 'u8[262144]{0}', space=vmem, size = 0x40000, scoped, tag = 'input window, operand 2, single buffered']
    #allocation8 [shape = 'u8[262144]{0}', space=vmem, size = 0x40000, scoped, tag = 'input window, operand 4, single buffered']
    #allocation9 [shape = 's32[1]{0}', space=sflag, size = 0x4, scoped, tag = 'scoped memory for tpu_custom_call.1']
    #allocation10 [shape = 'u8[12288]{0}', space=vmem, size = 0x3000, scoped, tag = 'output window, operand 0, single buffered']
    %11 = vsyncpa [#allocation3], 0
    %12 = vsyncpa [#allocation6], 0
    %13 = vsyncpa [#allocation9], 0
    %14 = vsyncpa [#allocation4], 0
    // Predicated region
    $region2: #{tpu_custom_call.1} parent=1 // pred_check
      _
    $region3: #{tpu_custom_call.1} parent=1 // pred_check_branch
      %16 = sbr.rel (0) target = $region5
    $region4: #{tpu_custom_call.1} parent=1 // pred_region
      %s18 = ssub.s32 384, 384
      %19 = vsyncadd [#allocation3], %s18
      %s20 = sshll.u32 [#allocation2], 4
      %s21 = int_to_ptr.vmem [resolvable:$true] %s20
      %26 = dma.hbm_to_vmem [thread:$0]  %s0, 384, %s21, [#allocation3], 128, 128, 8
    $region5: #{tpu_custom_call.1} parent=1 // pred_fallthru
      _
    // Predicated region
    $region6: #{tpu_custom_call.1} parent=1 // pred_check
      _
    $region7: #{tpu_custom_call.1} parent=1 // pred_check_branch
      %28 = sbr.rel (0) target = $region9
    $region8: #{tpu_custom_call.1} parent=1 // pred_region
      %s30 = ssub.s32 384, 384
      %31 = vsyncadd [#allocation6], %s30
      %s32 = sshll.u32 [#allocation5], 4
      %s33 = int_to_ptr.vmem [resolvable:$true] %s32
      %38 = dma.hbm_to_vmem [thread:$0]  %s1, 384, %s33, [#allocation6], 128, 128, 8
    $region9: #{tpu_custom_call.1} parent=1 // pred_fallthru
      _
    // Predicated region
    $region10: #{tpu_custom_call.1} parent=1 // pred_check
      _
    $region11: #{tpu_custom_call.1} parent=1 // pred_check_branch
      %40 = sbr.rel (0) target = $region13
    $region12: #{tpu_custom_call.1} parent=1 // pred_region
      %s42 = ssub.s32 8192, 8192
      %43 = vsyncadd [#allocation6], %s42
      %s44 = sshll.u32 [#allocation7], 4
      %s45 = int_to_ptr.vmem [resolvable:$true] %s44
      %50 = dma.hbm_to_vmem [thread:$0]  %s2, 8192, %s45, [#allocation6], 512, 512, 32
    $region13: #{tpu_custom_call.1} parent=1 // pred_fallthru
      _
    // Predicated region
    $region14: #{tpu_custom_call.1} parent=1 // pred_check
      _
    $region15: #{tpu_custom_call.1} parent=1 // pred_check_branch
      %52 = sbr.rel (0) target = $region17
    $region16: #{tpu_custom_call.1} parent=1 // pred_region
      _
    $region17: #{tpu_custom_call.1} parent=1 // pred_fallthru
      _
    // Predicated region
    $region18: #{tpu_custom_call.1} parent=1 // pred_check
      _
    $region19: #{tpu_custom_call.1} parent=1 // pred_check_branch
      %54 = sbr.rel (0) target = $region21
    $region20: #{tpu_custom_call.1} parent=1 // pred_region
      %s56 = ssub.s32 8192, 8192
      %57 = vsyncadd [#allocation9], %s56
      %s58 = sshll.u32 [#allocation8], 4
      %s59 = int_to_ptr.vmem [resolvable:$true] %s58
      %64 = dma.hbm_to_vmem [thread:$0]  %s4, 8192, %s59, [#allocation9], 128, 128, 8
    $region21: #{tpu_custom_call.1} parent=1 // pred_fallthru
      _
    // Predicated region
    $region22: #{tpu_custom_call.1} parent=1 // pred_check
      _
    $region23: #{tpu_custom_call.1} parent=1 // pred_check_branch
      %66 = sbr.rel (0) target = $region25
    $region24: #{tpu_custom_call.1} parent=1 // pred_region
      _
    $region25: #{tpu_custom_call.1} parent=1 // pred_fallthru
      _
    // Predicated region
    $region26: #{tpu_custom_call.1} parent=1 // pred_check
      _
    $region27: #{tpu_custom_call.1} parent=1 // pred_check_branch
      %68 = sbr.rel (0) target = $region29
    $region28: #{tpu_custom_call.1} parent=1 // pred_region
      %69 = dma.done [#allocation3], 384
    $region29: #{tpu_custom_call.1} parent=1 // pred_fallthru
      _
    // Predicated region
    $region30: #{tpu_custom_call.1} parent=1 // pred_check
      _
    $region31: #{tpu_custom_call.1} parent=1 // pred_check_branch
      %71 = sbr.rel (0) target = $region33
    $region32: #{tpu_custom_call.1} parent=1 // pred_region
      %72 = dma.done [#allocation6], 384
    $region33: #{tpu_custom_call.1} parent=1 // pred_fallthru
      _
    // Predicated region
    $region34: #{tpu_custom_call.1} parent=1 // pred_check
      _
    $region35: #{tpu_custom_call.1} parent=1 // pred_check_branch
      %74 = sbr.rel (0) target = $region37
    $region36: #{tpu_custom_call.1} parent=1 // pred_region
      %75 = dma.done [#allocation6], 8192
    $region37: #{tpu_custom_call.1} parent=1 // pred_fallthru
      _
    // Predicated region
    $region38: #{tpu_custom_call.1} parent=1 // pred_check
      _
    $region39: #{tpu_custom_call.1} parent=1 // pred_check_branch
      %77 = sbr.rel (0) target = $region41
    $region40: #{tpu_custom_call.1} parent=1 // pred_region
      %78 = dma.done [#allocation9], 8192
    $region41: #{tpu_custom_call.1} parent=1 // pred_fallthru
      _
    %v79 = vld [vmem:[#allocation2] sm:$0xff]
    %v80 = vld [vmem:[#allocation2 + $0x8] sm:$0xff]
    %v81 = vld [vmem:[#allocation2 + $0x10] sm:$0x3]
    %v82 = vld [vmem:[#allocation7] sm:$0xff]
    %v83 = vld [vmem:[#allocation7 + $0x8] sm:$0xff]
    %v84 = vld [vmem:[#allocation7 + $0x10] sm:$0xff]
    %v85 = vld [vmem:[#allocation7 + $0x18] sm:$0xff]
    %v86 = vld [vmem:[#allocation7 + $0x20] sm:$0xff]
    %v87 = vld [vmem:[#allocation7 + $0x28] sm:$0xff]
    %v88 = vld [vmem:[#allocation7 + $0x30] sm:$0xff]
    %v89 = vld [vmem:[#allocation7 + $0x38] sm:$0xff]
    %v90 = vld [vmem:[#allocation7 + $0x40] sm:$0xff]
    %v91 = vld [vmem:[#allocation7 + $0x48] sm:$0xff]
    %v92 = vld [vmem:[#allocation7 + $0x50] sm:$0xff]
    %v93 = vld [vmem:[#allocation7 + $0x58] sm:$0xff]
    %v94 = vld [vmem:[#allocation7 + $0x60] sm:$0xff]
    %v95 = vld [vmem:[#allocation7 + $0x68] sm:$0xff]
    %v96 = vld [vmem:[#allocation7 + $0x70] sm:$0xff]
    %v97 = vld [vmem:[#allocation7 + $0x78] sm:$0xff]
    %v98 = vld [vmem:[#allocation7 + $0x80] sm:$0xff]
    %v99 = vld [vmem:[#allocation7 + $0x88] sm:$0xff]
    %v100 = vld [vmem:[#allocation7 + $0x90] sm:$0xff]
    %v101 = vld [vmem:[#allocation7 + $0x98] sm:$0xff]
    %v102 = vld [vmem:[#allocation7 + $0xa0] sm:$0xff]
    %v103 = vld [vmem:[#allocation7 + $0xa8] sm:$0xff]
    %v104 = vld [vmem:[#allocation7 + $0xb0] sm:$0xff]
    %v105 = vld [vmem:[#allocation7 + $0xb8] sm:$0xff]
    %v106 = vld [vmem:[#allocation7 + $0xc0] sm:$0xff]
    %v107 = vld [vmem:[#allocation7 + $0xc8] sm:$0xff]
    %v108 = vld [vmem:[#allocation7 + $0xd0] sm:$0xff]
    %v109 = vld [vmem:[#allocation7 + $0xd8] sm:$0xff]
    %v110 = vld [vmem:[#allocation7 + $0xe0] sm:$0xff]
    %v111 = vld [vmem:[#allocation7 + $0xe8] sm:$0xff]
    %v112 = vld [vmem:[#allocation7 + $0xf0] sm:$0xff]
    %v113 = vld [vmem:[#allocation7 + $0xf8] sm:$0xff]
    %v114 = vld [vmem:[#allocation7 + $0x100] sm:$0xff]
    %v115 = vld [vmem:[#allocation7 + $0x108] sm:$0xff]
    %v116 = vld [vmem:[#allocation7 + $0x110] sm:$0xff]
    %v117 = vld [vmem:[#allocation7 + $0x118] sm:$0xff]
    %v118 = vld [vmem:[#allocation7 + $0x120] sm:$0xff]
    %v119 = vld [vmem:[#allocation7 + $0x128] sm:$0xff]
    %v120 = vld [vmem:[#allocation7 + $0x130] sm:$0xff]
    %v121 = vld [vmem:[#allocation7 + $0x138] sm:$0xff]
    %v122 = vld [vmem:[#allocation7 + $0x140] sm:$0xff]
    %v123 = vld [vmem:[#allocation7 + $0x148] sm:$0xff]
    %v124 = vld [vmem:[#allocation7 + $0x150] sm:$0xff]
    %v125 = vld [vmem:[#allocation7 + $0x158] sm:$0xff]
    %v126 = vld [vmem:[#allocation7 + $0x160] sm:$0xff]
    %v127 = vld [vmem:[#allocation7 + $0x168] sm:$0xff]
    %v128 = vld [vmem:[#allocation7 + $0x170] sm:$0xff]
    %v129 = vld [vmem:[#allocation7 + $0x178] sm:$0xff]
    %v130 = vld [vmem:[#allocation7 + $0x180] sm:$0xff]
    %v131 = vld [vmem:[#allocation7 + $0x188] sm:$0xff]
    %v132 = vld [vmem:[#allocation7 + $0x190] sm:$0xff]
    %v133 = vld [vmem:[#allocation7 + $0x198] sm:$0xff]
    %v134 = vld [vmem:[#allocation7 + $0x1a0] sm:$0xff]
    %v135 = vld [vmem:[#allocation7 + $0x1a8] sm:$0xff]
    %v136 = vld [vmem:[#allocation7 + $0x1b0] sm:$0xff]
    %v137 = vld [vmem:[#allocation7 + $0x1b8] sm:$0xff]
    %v138 = vld [vmem:[#allocation7 + $0x1c0] sm:$0xff]
    %v139 = vld [vmem:[#allocation7 + $0x1c8] sm:$0xff]
    %v140 = vld [vmem:[#allocation7 + $0x1d0] sm:$0xff]
    %v141 = vld [vmem:[#allocation7 + $0x1d8] sm:$0xff]
    %v142 = vld [vmem:[#allocation7 + $0x1e0] sm:$0xff]
    %v143 = vld [vmem:[#allocation7 + $0x1e8] sm:$0xff]
    %v144 = vld [vmem:[#allocation7 + $0x1f0] sm:$0xff]
    %v145 = vld [vmem:[#allocation7 + $0x1f8] sm:$0xff]
    %v146 = vld [vmem:[%s3] sm:$0xf]
    %v148 = vlaneseq
    %v149 = vshrl.u32 %v148, 7
    %v150 = vsub.s32 0, %v149
    %v151 = vrot.slane %v146, %v150
    %v152 = vlaneseq
    %v153 = vshrl.u32 %v152, 7
    %v154 = vsub.s32 1, %v153
    %v155 = vrot.slane %v146, %v154
    %v156 = vlaneseq
    %v157 = vshrl.u32 %v156, 7
    %v158 = vsub.s32 2, %v157
    %v159 = vrot.slane %v146, %v158
    %v160 = vlaneseq
    %v161 = vshrl.u32 %v160, 7
    %v162 = vsub.s32 3, %v161
    %v163 = vrot.slane %v146, %v162
    %168 = vmatprep.subr.mxu0 %v83
    %169 = vmatpush1.msra.mxu0 %v82
    %170 = vmatprep.subr.mxu0 %v87
    %171 = vmatpush1.msra.mxu0 %v86
    %172 = vmatprep.subr.mxu0 %v91
    %173 = vmatpush1.msra.mxu0 %v90
    %174 = vmatprep.subr.mxu0 %v95
    %175 = vmatpush1.msra.mxu0 %v94
    %176 = vmatprep.subr.mxu0 %v99
    %177 = vmatpush1.msra.mxu0 %v98
    %178 = vmatprep.subr.mxu0 %v103
    %179 = vmatpush1.msra.mxu0 %v102
    %180 = vmatprep.subr.mxu0 %v107
    %181 = vmatpush1.msra.mxu0 %v106
    %182 = vmatprep.subr.mxu0 %v111
    %183 = vmatpush1.msra.mxu0 %v110
    %184 = vmatprep.subr.mxu0 %v115
    %185 = vmatpush1.msra.mxu0 %v114
    %186 = vmatprep.subr.mxu0 %v119
    %187 = vmatpush1.msra.mxu0 %v118
    %188 = vmatprep.subr.mxu0 %v123
    %189 = vmatpush1.msra.mxu0 %v122
    %190 = vmatprep.subr.mxu0 %v127
    %191 = vmatpush1.msra.mxu0 %v126
    %192 = vmatprep.subr.mxu0 %v131
    %193 = vmatpush1.msra.mxu0 %v130
    %194 = vmatprep.subr.mxu0 %v135
    %195 = vmatpush1.msra.mxu0 %v134
    %196 = vmatprep.subr.mxu0 %v139
    %197 = vmatpush1.msra.mxu0 %v138
    %198 = vmatprep.subr.mxu0 %v143
    %199 = vmatpush1.msra.mxu0 %v142
    %200 = vmatprep.subr.mxu0 0.0
    %201 = vmatpush1.msra.mxu0 0.0
    %202 = vmatprep.subr.mxu0 0.0
    %203 = vmatpush1.msra.mxu0 0.0
    %204 = vmatprep.subr.mxu0 0.0
    %205 = vmatpush1.msra.mxu0 0.0
    %206 = vmatprep.subr.mxu0 0.0
    %207 = vmatpush1.msra.mxu0 0.0
    %208 = vmatprep.subr.mxu0 0.0
    %209 = vmatpush1.msra.mxu0 0.0
    %210 = vmatprep.subr.mxu0 0.0
    %211 = vmatpush1.msra.mxu0 0.0
    %212 = vmatprep.subr.mxu0 0.0
    %213 = vmatpush1.msra.mxu0 0.0
    %214 = vmatprep.subr.mxu0 0.0
    %215 = vmatpush1.msra.mxu0 0.0
    %216 = vmatprep.subr.mxu0 0.0
    %217 = vmatpush1.msra.mxu0 0.0
    %218 = vmatprep.subr.mxu0 0.0
    %219 = vmatpush1.msra.mxu0 0.0
    %220 = vmatprep.subr.mxu0 0.0
    %221 = vmatpush1.msra.mxu0 0.0
    %222 = vmatprep.subr.mxu0 0.0
    %223 = vmatpush1.msra.mxu0 0.0
    %224 = vmatprep.subr.mxu0 0.0
    %225 = vmatpush1.msra.mxu0 0.0
    %226 = vmatprep.subr.mxu0 0.0
    %227 = vmatpush1.msra.mxu0 0.0
    %228 = vmatprep.subr.mxu0 0.0
    %229 = vmatpush1.msra.mxu0 0.0
    %230 = vmatprep.subr.mxu0 0.0
    %231 = vmatpush1.msra.mxu0 0.0
    %232 = vmatprep.mubr.f32.mxu0 0.0
    %233 = vmatmul.mubr.f32.gmra.mrb[0].mxu0 %v79
    %v234 = vpop.f32.mrb[0].mxu0
    %v235 = vadd.f32 %v151, %v234
    %v236 = vpop.f32.mrb[0].mxu0
    %v237 = vadd.f32 %v155, %v236
    %238 = vmatprep.mubr.f32.mxu0 0.0
    %239 = vmatmul.mubr.f32.gmra.mrb[0].mxu0 %v80
    %v240 = vpop.f32.mrb[0].mxu0
    %v241 = vadd.f32 %v151, %v240
    %v242 = vpop.f32.mrb[0].mxu0
    %v243 = vadd.f32 %v155, %v242
    %244 = vmatprep.mubr.f32.mxu0 0.0
    %245 = vmatmul.mubr.f32.gmra.mrb[0].mxu0 %v81
    %v246 = vpop.f32.mrb[0].mxu0
    %v247 = vadd.f32 %v151, %v246
    %v248 = vpop.f32.mrb[0].mxu0
    %v249 = vadd.f32 %v155, %v248
    %250 = vdwg.mxu0
    %251 = vmatprep.subr.mxu0 %v85
    %252 = vmatpush1.msra.mxu0 %v84
    %253 = vmatprep.subr.mxu0 %v89
    %254 = vmatpush1.msra.mxu0 %v88
    %255 = vmatprep.subr.mxu0 %v93
    %256 = vmatpush1.msra.mxu0 %v92
    %257 = vmatprep.subr.mxu0 %v97
    %258 = vmatpush1.msra.mxu0 %v96
    %259 = vmatprep.subr.mxu0 %v101
    %260 = vmatpush1.msra.mxu0 %v100
    %261 = vmatprep.subr.mxu0 %v105
    %262 = vmatpush1.msra.mxu0 %v104
    %263 = vmatprep.subr.mxu0 %v109
    %264 = vmatpush1.msra.mxu0 %v108
    %265 = vmatprep.subr.mxu0 %v113
    %266 = vmatpush1.msra.mxu0 %v112
    %267 = vmatprep.subr.mxu0 %v117
    %268 = vmatpush1.msra.mxu0 %v116
    %269 = vmatprep.subr.mxu0 %v121
    %270 = vmatpush1.msra.mxu0 %v120
    %271 = vmatprep.subr.mxu0 %v125
    %272 = vmatpush1.msra.mxu0 %v124
    %273 = vmatprep.subr.mxu0 %v129
    %274 = vmatpush1.msra.mxu0 %v128
    %275 = vmatprep.subr.mxu0 %v133
    %276 = vmatpush1.msra.mxu0 %v132
    %277 = vmatprep.subr.mxu0 %v137
    %278 = vmatpush1.msra.mxu0 %v136
    %279 = vmatprep.subr.mxu0 %v141
    %280 = vmatpush1.msra.mxu0 %v140
    %281 = vmatprep.subr.mxu0 %v145
    %282 = vmatpush1.msra.mxu0 %v144
    %283 = vmatprep.subr.mxu0 0.0
    %284 = vmatpush1.msra.mxu0 0.0
    %285 = vmatprep.subr.mxu0 0.0
    %286 = vmatpush1.msra.mxu0 0.0
    %287 = vmatprep.subr.mxu0 0.0
    %288 = vmatpush1.msra.mxu0 0.0
    %289 = vmatprep.subr.mxu0 0.0
    %290 = vmatpush1.msra.mxu0 0.0
    %291 = vmatprep.subr.mxu0 0.0
    %292 = vmatpush1.msra.mxu0 0.0
    %293 = vmatprep.subr.mxu0 0.0
    %294 = vmatpush1.msra.mxu0 0.0
    %295 = vmatprep.subr.mxu0 0.0
    %296 = vmatpush1.msra.mxu0 0.0
    %297 = vmatprep.subr.mxu0 0.0
    %298 = vmatpush1.msra.mxu0 0.0
    %299 = vmatprep.subr.mxu0 0.0
    %300 = vmatpush1.msra.mxu0 0.0
    %301 = vmatprep.subr.mxu0 0.0
    %302 = vmatpush1.msra.mxu0 0.0
    %303 = vmatprep.subr.mxu0 0.0
    %304 = vmatpush1.msra.mxu0 0.0
    %305 = vmatprep.subr.mxu0 0.0
    %306 = vmatpush1.msra.mxu0 0.0
    %307 = vmatprep.subr.mxu0 0.0
    %308 = vmatpush1.msra.mxu0 0.0
    %309 = vmatprep.subr.mxu0 0.0
    %310 = vmatpush1.msra.mxu0 0.0
    %311 = vmatprep.subr.mxu0 0.0
    %312 = vmatpush1.msra.mxu0 0.0
    %313 = vmatprep.subr.mxu0 0.0
    %314 = vmatpush1.msra.mxu0 0.0
    %315 = vmatprep.mubr.f32.mxu0 0.0
    %316 = vmatmul.mubr.f32.gmra.mrb[0].mxu0 %v79
    %v317 = vpop.f32.mrb[0].mxu0
    %v318 = vadd.f32 %v159, %v317
    %v319 = vpop.f32.mrb[0].mxu0
    %v320 = vadd.f32 %v163, %v319
    %321 = vmatprep.mubr.f32.mxu0 0.0
    %322 = vmatmul.mubr.f32.gmra.mrb[0].mxu0 %v80
    %v323 = vpop.f32.mrb[0].mxu0
    %v324 = vadd.f32 %v159, %v323
    %v325 = vpop.f32.mrb[0].mxu0
    %v326 = vadd.f32 %v163, %v325
    %327 = vmatprep.mubr.f32.mxu0 0.0
    %328 = vmatmul.mubr.f32.gmra.mrb[0].mxu0 %v81
    %v329 = vpop.f32.mrb[0].mxu0
    %v330 = vadd.f32 %v159, %v329
    %v331 = vpop.f32.mrb[0].mxu0
    %v332 = vadd.f32 %v163, %v331
    %333 = vdwg.mxu0
    %v334 = vmul.f32 %v235, 0.5
    %v335 = vmul.f32 %v237, 0.5
    %v336 = vmul.f32 %v318, 0.5
    %v337 = vmul.f32 %v320, 0.5
    %v338 = vmul.f32 %v241, 0.5
    %v339 = vmul.f32 %v243, 0.5
    %v340 = vmul.f32 %v324, 0.5
    %v341 = vmul.f32 %v326, 0.5
    %v342 = vmul.f32 %v247, 0.5
    %v343 = vmul.f32 %v249, 0.5
    %v344 = vmul.f32 %v330, 0.5
    %v345 = vmul.f32 %v332, 0.5
    %v346 = vmul.f32 %v235, 0.044715
    %v347 = vmul.f32 %v237, 0.044715
    %v348 = vmul.f32 %v318, 0.044715
    %v349 = vmul.f32 %v320, 0.044715
    %v350 = vmul.f32 %v241, 0.044715
    %v351 = vmul.f32 %v243, 0.044715
    %v352 = vmul.f32 %v324, 0.044715
    %v353 = vmul.f32 %v326, 0.044715
    %v354 = vmul.f32 %v247, 0.044715
    %v355 = vmul.f32 %v249, 0.044715
    %v356 = vmul.f32 %v330, 0.044715
    %v357 = vmul.f32 %v332, 0.044715
    %v358 = vmul.f32 %v346, %v235
    %v359 = vmul.f32 %v347, %v237
    %v360 = vmul.f32 %v348, %v318
    %v361 = vmul.f32 %v349, %v320
    %v362 = vmul.f32 %v350, %v241
    %v363 = vmul.f32 %v351, %v243
    %v364 = vmul.f32 %v352, %v324
    %v365 = vmul.f32 %v353, %v326
    %v366 = vmul.f32 %v354, %v247
    %v367 = vmul.f32 %v355, %v249
    %v368 = vmul.f32 %v356, %v330
    %v369 = vmul.f32 %v357, %v332
    %v370 = vmul.f32 %v358, %v235
    %v371 = vmul.f32 %v359, %v237
    %v372 = vmul.f32 %v360, %v318
    %v373 = vmul.f32 %v361, %v320
    %v374 = vmul.f32 %v362, %v241
    %v375 = vmul.f32 %v363, %v243
    %v376 = vmul.f32 %v364, %v324
    %v377 = vmul.f32 %v365, %v326
    %v378 = vmul.f32 %v366, %v247
    %v379 = vmul.f32 %v367, %v249
    %v380 = vmul.f32 %v368, %v330
    %v381 = vmul.f32 %v369, %v332
    %v382 = vadd.f32 %v235, %v370
    %v383 = vadd.f32 %v237, %v371
    %v384 = vadd.f32 %v318, %v372
    %v385 = vadd.f32 %v320, %v373
    %v386 = vadd.f32 %v241, %v374
    %v387 = vadd.f32 %v243, %v375
    %v388 = vadd.f32 %v324, %v376
    %v389 = vadd.f32 %v326, %v377
    %v390 = vadd.f32 %v247, %v378
    %v391 = vadd.f32 %v249, %v379
    %v392 = vadd.f32 %v330, %v380
    %v393 = vadd.f32 %v332, %v381
    %v394 = vmul.f32 %v382, 0.7978846
    %v395 = vmul.f32 %v383, 0.7978846
    %v396 = vmul.f32 %v384, 0.7978846
    %v397 = vmul.f32 %v385, 0.7978846
    %v398 = vmul.f32 %v386, 0.7978846
    %v399 = vmul.f32 %v387, 0.7978846
    %v400 = vmul.f32 %v388, 0.7978846
    %v401 = vmul.f32 %v389, 0.7978846
    %v402 = vmul.f32 %v390, 0.7978846
    %v403 = vmul.f32 %v391, 0.7978846
    %v404 = vmul.f32 %v392, 0.7978846
    %v405 = vmul.f32 %v393, 0.7978846
    %v406 = vtanh.pop %v394
    %v407 = vtanh.pop %v395
    %v408 = vtanh.pop %v396
    %v409 = vtanh.pop %v397
    %v410 = vtanh.pop %v398
    %v411 = vtanh.pop %v399
    %v412 = vtanh.pop %v400
    %v413 = vtanh.pop %v401
    %v414 = vtanh.pop %v402
    %v415 = vtanh.pop %v403
    %v416 = vtanh.pop %v404
    %v417 = vtanh.pop %v405
    %v418 = vadd.f32 %v406, 1.0
    %v419 = vadd.f32 %v407, 1.0
    %v420 = vadd.f32 %v408, 1.0
    %v421 = vadd.f32 %v409, 1.0
    %v422 = vadd.f32 %v410, 1.0
    %v423 = vadd.f32 %v411, 1.0
    %v424 = vadd.f32 %v412, 1.0
    %v425 = vadd.f32 %v413, 1.0
    %v426 = vadd.f32 %v414, 1.0
    %v427 = vadd.f32 %v415, 1.0
    %v428 = vadd.f32 %v416, 1.0
    %v429 = vadd.f32 %v417, 1.0
    %v430 = vmul.f32 %v334, %v418
    %v431 = vmul.f32 %v335, %v419
    %v432 = vmul.f32 %v336, %v420
    %v433 = vmul.f32 %v337, %v421
    %v434 = vmul.f32 %v338, %v422
    %v435 = vmul.f32 %v339, %v423
    %v436 = vmul.f32 %v340, %v424
    %v437 = vmul.f32 %v341, %v425
    %v438 = vmul.f32 %v342, %v426
    %v439 = vmul.f32 %v343, %v427
    %v440 = vmul.f32 %v344, %v428
    %v441 = vmul.f32 %v345, %v429
    %v442 = vld [vmem:[#allocation8] sm:$0xff]
    %v443 = vld [vmem:[#allocation8 + $0x8] sm:$0xff]
    %v444 = vld [vmem:[#allocation8 + $0x10] sm:$0xff]
    %v445 = vld [vmem:[#allocation8 + $0x18] sm:$0xff]
    %v446 = vld [vmem:[#allocation8 + $0x20] sm:$0xff]
    %v447 = vld [vmem:[#allocation8 + $0x28] sm:$0xff]
    %v448 = vld [vmem:[#allocation8 + $0x30] sm:$0xff]
    %v449 = vld [vmem:[#allocation8 + $0x38] sm:$0xff]
    %v450 = vld [vmem:[#allocation8 + $0x40] sm:$0xff]
    %v451 = vld [vmem:[#allocation8 + $0x48] sm:$0xff]
    %v452 = vld [vmem:[#allocation8 + $0x50] sm:$0xff]
    %v453 = vld [vmem:[#allocation8 + $0x58] sm:$0xff]
    %v454 = vld [vmem:[#allocation8 + $0x60] sm:$0xff]
    %v455 = vld [vmem:[#allocation8 + $0x68] sm:$0xff]
    %v456 = vld [vmem:[#allocation8 + $0x70] sm:$0xff]
    %v457 = vld [vmem:[#allocation8 + $0x78] sm:$0xff]
    %v458 = vld [vmem:[#allocation8 + $0x80] sm:$0xff]
    %v459 = vld [vmem:[#allocation8 + $0x88] sm:$0xff]
    %v460 = vld [vmem:[#allocation8 + $0x90] sm:$0xff]
    %v461 = vld [vmem:[#allocation8 + $0x98] sm:$0xff]
    %v462 = vld [vmem:[#allocation8 + $0xa0] sm:$0xff]
    %v463 = vld [vmem:[#allocation8 + $0xa8] sm:$0xff]
    %v464 = vld [vmem:[#allocation8 + $0xb0] sm:$0xff]
    %v465 = vld [vmem:[#allocation8 + $0xb8] sm:$0xff]
    %v466 = vld [vmem:[#allocation8 + $0xc0] sm:$0xff]
    %v467 = vld [vmem:[#allocation8 + $0xc8] sm:$0xff]
    %v468 = vld [vmem:[#allocation8 + $0xd0] sm:$0xff]
    %v469 = vld [vmem:[#allocation8 + $0xd8] sm:$0xff]
    %v470 = vld [vmem:[#allocation8 + $0xe0] sm:$0xff]
    %v471 = vld [vmem:[#allocation8 + $0xe8] sm:$0xff]
    %v472 = vld [vmem:[#allocation8 + $0xf0] sm:$0xff]
    %v473 = vld [vmem:[#allocation8 + $0xf8] sm:$0xff]
    %v474 = vld [vmem:[#allocation8 + $0x100] sm:$0xff]
    %v475 = vld [vmem:[#allocation8 + $0x108] sm:$0xff]
    %v476 = vld [vmem:[#allocation8 + $0x110] sm:$0xff]
    %v477 = vld [vmem:[#allocation8 + $0x118] sm:$0xff]
    %v478 = vld [vmem:[#allocation8 + $0x120] sm:$0xff]
    %v479 = vld [vmem:[#allocation8 + $0x128] sm:$0xff]
    %v480 = vld [vmem:[#allocation8 + $0x130] sm:$0xff]
    %v481 = vld [vmem:[#allocation8 + $0x138] sm:$0xff]
    %v482 = vld [vmem:[#allocation8 + $0x140] sm:$0xff]
    %v483 = vld [vmem:[#allocation8 + $0x148] sm:$0xff]
    %v484 = vld [vmem:[#allocation8 + $0x150] sm:$0xff]
    %v485 = vld [vmem:[#allocation8 + $0x158] sm:$0xff]
    %v486 = vld [vmem:[#allocation8 + $0x160] sm:$0xff]
    %v487 = vld [vmem:[#allocation8 + $0x168] sm:$0xff]
    %v488 = vld [vmem:[#allocation8 + $0x170] sm:$0xff]
    %v489 = vld [vmem:[#allocation8 + $0x178] sm:$0xff]
    %v490 = vld [vmem:[#allocation8 + $0x180] sm:$0xff]
    %v491 = vld [vmem:[#allocation8 + $0x188] sm:$0xff]
    %v492 = vld [vmem:[#allocation8 + $0x190] sm:$0xff]
    %v493 = vld [vmem:[#allocation8 + $0x198] sm:$0xff]
    %v494 = vld [vmem:[#allocation8 + $0x1a0] sm:$0xff]
    %v495 = vld [vmem:[#allocation8 + $0x1a8] sm:$0xff]
    %v496 = vld [vmem:[#allocation8 + $0x1b0] sm:$0xff]
    %v497 = vld [vmem:[#allocation8 + $0x1b8] sm:$0xff]
    %v498 = vld [vmem:[#allocation8 + $0x1c0] sm:$0xff]
    %v499 = vld [vmem:[#allocation8 + $0x1c8] sm:$0xff]
    %v500 = vld [vmem:[#allocation8 + $0x1d0] sm:$0xff]
    %v501 = vld [vmem:[#allocation8 + $0x1d8] sm:$0xff]
    %v502 = vld [vmem:[#allocation8 + $0x1e0] sm:$0xff]
    %v503 = vld [vmem:[#allocation8 + $0x1e8] sm:$0xff]
    %v504 = vld [vmem:[#allocation8 + $0x1f0] sm:$0xff]
    %v505 = vld [vmem:[#allocation8 + $0x1f8] sm:$0xff]
    %v506 = vld [vmem:[%s5] sm:$0x1]
    %v508 = vlaneseq
    %v509 = vshrl.u32 %v508, 7
    %v510 = vsub.s32 0, %v509
    %v511 = vrot.slane %v506, %v510
    %513 = vmatprep.subr.mxu0 0.0
    %514 = vmatpush1.msra.mxu0 %v442
    %515 = vmatprep.subr.mxu0 0.0
    %516 = vmatpush1.msra.mxu0 %v443
    %517 = vmatprep.subr.mxu0 0.0
    %518 = vmatpush1.msra.mxu0 %v444
    %519 = vmatprep.subr.mxu0 0.0
    %520 = vmatpush1.msra.mxu0 %v445
    %521 = vmatprep.subr.mxu0 0.0
    %522 = vmatpush1.msra.mxu0 %v446
    %523 = vmatprep.subr.mxu0 0.0
    %524 = vmatpush1.msra.mxu0 %v447
    %525 = vmatprep.subr.mxu0 0.0
    %526 = vmatpush1.msra.mxu0 %v448
    %527 = vmatprep.subr.mxu0 0.0
    %528 = vmatpush1.msra.mxu0 %v449
    %529 = vmatprep.subr.mxu0 0.0
    %530 = vmatpush1.msra.mxu0 %v450
    %531 = vmatprep.subr.mxu0 0.0
    %532 = vmatpush1.msra.mxu0 %v451
    %533 = vmatprep.subr.mxu0 0.0
    %534 = vmatpush1.msra.mxu0 %v452
    %535 = vmatprep.subr.mxu0 0.0
    %536 = vmatpush1.msra.mxu0 %v453
    %537 = vmatprep.subr.mxu0 0.0
    %538 = vmatpush1.msra.mxu0 %v454
    %539 = vmatprep.subr.mxu0 0.0
    %540 = vmatpush1.msra.mxu0 %v455
    %541 = vmatprep.subr.mxu0 0.0
    %542 = vmatpush1.msra.mxu0 %v456
    %543 = vmatprep.subr.mxu0 0.0
    %544 = vmatpush1.msra.mxu0 %v457
    %545 = vmatprep.subr.mxu0 0.0
    %546 = vmatpush1.msra.mxu0 %v458
    %547 = vmatprep.subr.mxu0 0.0
    %548 = vmatpush1.msra.mxu0 %v459
    %549 = vmatprep.subr.mxu0 0.0
    %550 = vmatpush1.msra.mxu0 %v460
    %551 = vmatprep.subr.mxu0 0.0
    %552 = vmatpush1.msra.mxu0 %v461
    %553 = vmatprep.subr.mxu0 0.0
    %554 = vmatpush1.msra.mxu0 %v462
    %555 = vmatprep.subr.mxu0 0.0
    %556 = vmatpush1.msra.mxu0 %v463
    %557 = vmatprep.subr.mxu0 0.0
    %558 = vmatpush1.msra.mxu0 %v464
    %559 = vmatprep.subr.mxu0 0.0
    %560 = vmatpush1.msra.mxu0 %v465
    %561 = vmatprep.subr.mxu0 0.0
    %562 = vmatpush1.msra.mxu0 %v466
    %563 = vmatprep.subr.mxu0 0.0
    %564 = vmatpush1.msra.mxu0 %v467
    %565 = vmatprep.subr.mxu0 0.0
    %566 = vmatpush1.msra.mxu0 %v468
    %567 = vmatprep.subr.mxu0 0.0
    %568 = vmatpush1.msra.mxu0 %v469
    %569 = vmatprep.subr.mxu0 0.0
    %570 = vmatpush1.msra.mxu0 %v470
    %571 = vmatprep.subr.mxu0 0.0
    %572 = vmatpush1.msra.mxu0 %v471
    %573 = vmatprep.subr.mxu0 0.0
    %574 = vmatpush1.msra.mxu0 %v472
    %575 = vmatprep.subr.mxu0 0.0
    %576 = vmatpush1.msra.mxu0 %v473
    %577 = vmatprep.mubr.f32.mxu0 %v431
    %578 = vmatmul.mubr.f32.gmra.mrb[0].mxu0 %v430
    %v579 = vpop.f32.mrb[0].mxu0
    %v580 = vadd.f32 %v511, %v579
    %v581 = vpop.f32.mrb[0].mxu0
    %582 = vmatprep.mubr.f32.mxu0 %v435
    %583 = vmatmul.mubr.f32.gmra.mrb[0].mxu0 %v434
    %v584 = vpop.f32.mrb[0].mxu0
    %v585 = vadd.f32 %v511, %v584
    %v586 = vpop.f32.mrb[0].mxu0
    %587 = vmatprep.mubr.f32.mxu0 %v439
    %588 = vmatmul.mubr.f32.gmra.mrb[0].mxu0 %v438
    %v589 = vpop.f32.mrb[0].mxu0
    %v590 = vadd.f32 %v511, %v589
    %v591 = vpop.f32.mrb[0].mxu0
    %592 = vdwg.mxu0
    %593 = vmatprep.subr.mxu0 0.0
    %594 = vmatpush1.msra.mxu0 %v474
    %595 = vmatprep.subr.mxu0 0.0
    %596 = vmatpush1.msra.mxu0 %v475
    %597 = vmatprep.subr.mxu0 0.0
    %598 = vmatpush1.msra.mxu0 %v476
    %599 = vmatprep.subr.mxu0 0.0
    %600 = vmatpush1.msra.mxu0 %v477
    %601 = vmatprep.subr.mxu0 0.0
    %602 = vmatpush1.msra.mxu0 %v478
    %603 = vmatprep.subr.mxu0 0.0
    %604 = vmatpush1.msra.mxu0 %v479
    %605 = vmatprep.subr.mxu0 0.0
    %606 = vmatpush1.msra.mxu0 %v480
    %607 = vmatprep.subr.mxu0 0.0
    %608 = vmatpush1.msra.mxu0 %v481
    %609 = vmatprep.subr.mxu0 0.0
    %610 = vmatpush1.msra.mxu0 %v482
    %611 = vmatprep.subr.mxu0 0.0
    %612 = vmatpush1.msra.mxu0 %v483
    %613 = vmatprep.subr.mxu0 0.0
    %614 = vmatpush1.msra.mxu0 %v484
    %615 = vmatprep.subr.mxu0 0.0
    %616 = vmatpush1.msra.mxu0 %v485
    %617 = vmatprep.subr.mxu0 0.0
    %618 = vmatpush1.msra.mxu0 %v486
    %619 = vmatprep.subr.mxu0 0.0
    %620 = vmatpush1.msra.mxu0 %v487
    %621 = vmatprep.subr.mxu0 0.0
    %622 = vmatpush1.msra.mxu0 %v488
    %623 = vmatprep.subr.mxu0 0.0
    %624 = vmatpush1.msra.mxu0 %v489
    %625 = vmatprep.subr.mxu0 0.0
    %626 = vmatpush1.msra.mxu0 %v490
    %627 = vmatprep.subr.mxu0 0.0
    %628 = vmatpush1.msra.mxu0 %v491
    %629 = vmatprep.subr.mxu0 0.0
    %630 = vmatpush1.msra.mxu0 %v492
    %631 = vmatprep.subr.mxu0 0.0
    %632 = vmatpush1.msra.mxu0 %v493
    %633 = vmatprep.subr.mxu0 0.0
    %634 = vmatpush1.msra.mxu0 %v494
    %635 = vmatprep.subr.mxu0 0.0
    %636 = vmatpush1.msra.mxu0 %v495
    %637 = vmatprep.subr.mxu0 0.0
    %638 = vmatpush1.msra.mxu0 %v496
    %639 = vmatprep.subr.mxu0 0.0
    %640 = vmatpush1.msra.mxu0 %v497
    %641 = vmatprep.subr.mxu0 0.0
    %642 = vmatpush1.msra.mxu0 %v498
    %643 = vmatprep.subr.mxu0 0.0
    %644 = vmatpush1.msra.mxu0 %v499
    %645 = vmatprep.subr.mxu0 0.0
    %646 = vmatpush1.msra.mxu0 %v500
    %647 = vmatprep.subr.mxu0 0.0
    %648 = vmatpush1.msra.mxu0 %v501
    %649 = vmatprep.subr.mxu0 0.0
    %650 = vmatpush1.msra.mxu0 %v502
    %651 = vmatprep.subr.mxu0 0.0
    %652 = vmatpush1.msra.mxu0 %v503
    %653 = vmatprep.subr.mxu0 0.0
    %654 = vmatpush1.msra.mxu0 %v504
    %655 = vmatprep.subr.mxu0 0.0
    %656 = vmatpush1.msra.mxu0 %v505
    %657 = vmatprep.mubr.f32.mxu0 %v433
    %658 = vmatmul.mubr.f32.gmra.mrb[0].mxu0 %v432
    %v659 = vpop.f32.mrb[0].mxu0
    %v660 = vadd.f32 %v580, %v659
    %v661 = vpop.f32.mrb[0].mxu0
    %662 = vmatprep.mubr.f32.mxu0 %v437
    %663 = vmatmul.mubr.f32.gmra.mrb[0].mxu0 %v436
    %v664 = vpop.f32.mrb[0].mxu0
    %v665 = vadd.f32 %v585, %v664
    %v666 = vpop.f32.mrb[0].mxu0
    %667 = vmatprep.mubr.f32.mxu0 %v441
    %668 = vmatmul.mubr.f32.gmra.mrb[0].mxu0 %v440
    %v669 = vpop.f32.mrb[0].mxu0
    %v670 = vadd.f32 %v590, %v669
    %v671 = vpop.f32.mrb[0].mxu0
    %672 = vdwg.mxu0
    %v673 = vld [vmem:[#allocation5] sm:$0xff]
    %v674 = vld [vmem:[#allocation5 + $0x8] sm:$0xff]
    %v675 = vld [vmem:[#allocation5 + $0x10] sm:$0x3]
    %v676 = vadd.f32 %v660, %v673
    %v677 = vadd.f32 %v665, %v674
    %v678 = vadd.f32 %v670, %v675
    %679 = vst [vmem:[#allocation10] sm:$0xff] %v676
    %680 = vst [vmem:[#allocation10 + $0x8] sm:$0xff] %v677
    %681 = vst [vmem:[#allocation10 + $0x10] sm:$0x3] %v678
    // Predicated region
    $region42: #{tpu_custom_call.1} parent=1 // pred_check
      _
    $region43: #{tpu_custom_call.1} parent=1 // pred_check_branch
      %683 = sbr.rel (0) target = $region45
    $region44: #{tpu_custom_call.1} parent=1 // pred_region
      %s685 = ssub.s32 384, 384
      %686 = vsyncadd [#allocation4], %s685
      %s687 = sshll.u32 [#allocation10], 4
      %s688 = int_to_ptr.vmem [resolvable:$true] %s687
      %693 = dma.vmem_to_hbm [thread:$0]  %s688, 384, %s6, [#allocation4], 128, 128, 8
    $region45: #{tpu_custom_call.1} parent=1 // pred_fallthru
      _
    // Predicated region
    $region46: #{tpu_custom_call.1} parent=1 // pred_check
      _
    $region47: #{tpu_custom_call.1} parent=1 // pred_check_branch
      %695 = sbr.rel (0) target = $region49
    $region48: #{tpu_custom_call.1} parent=1 // pred_region
      %696 = dma.done [#allocation4], 384
    $region49: #{tpu_custom_call.1} parent=1 // pred_fallthru
      _
    %697 = vsyncpa [#allocation3], 1
    %698 = vsyncpa [#allocation6], 1
    %699 = vsyncpa [#allocation9], 1
    %700 = vsyncpa [#allocation4], 1

</llo_original>
